<compile_context>
chip_gen: v7x
topology: tpu7x:2x2x1
jax: 0.10.0
libtpu: 0.0.40
codegen_flags: <defaults>
</compile_context>

<pallas_src>
import jax
import jax.numpy as jnp
import numpy as np
from jax import lax
from jax.experimental import pallas as pl
from jax.experimental.pallas import tpu as pltpu


def _rnn_seq_kernel(maxlen_ref, len_ref, p_ref, whh_ref, wlin_ref, blin_ref,
                    out_ref, h_scratch):
    # grid = (time_chunks,)  -- the only grid axis is the serial ("arbitrary") one.
    c = pl.program_id(0)
    tc, bt, _ = p_ref.shape                       # static
    chunk_start = c * tc
    unroll_n = tc if tc <= 16 else 8              # bounded unroll (perf review #6)
    split = (bt >= 16) and (bt % 16 == 0)         # two interleaved serial chains

    @pl.when(c == 0)
    def _():
        h_scratch[...] = jnp.zeros_like(h_scratch)

    # Skip chunks that lie entirely past the longest sequence (pure padding).
    @pl.when(chunk_start < maxlen_ref[0])
    def _():
        lens = len_ref[...]                       # (Bt, 1) int32

        if split:
            half = bt // 2
            lens_a = lens[:half]
            lens_b = lens[half:]

            def step(i, carry):                   # two independent (half, H) chains
                h_a, h_b = carry
                t = chunk_start + i
                w = whh_ref[i]                    # (H, H) bf16
                p_i = p_ref[i]                    # (Bt, H) f32
                pre_a = p_i[:half] + jnp.dot(h_a.astype(jnp.bfloat16), w,
                                             preferred_element_type=jnp.float32)
                pre_b = p_i[half:] + jnp.dot(h_b.astype(jnp.bfloat16), w,
                                             preferred_element_type=jnp.float32)
                n_a = jnp.tanh(pre_a)
                n_b = jnp.tanh(pre_b)
                # freeze each row's recurrence once its sequence has ended
                h_a = jnp.where(t < lens_a, n_a, h_a)
                h_b = jnp.where(t < lens_b, n_b, h_b)
                return (h_a, h_b)

            h_a, h_b = lax.fori_loop(0, tc, step,
                                     (h_scratch[:half], h_scratch[half:]),
                                     unroll=unroll_n)
            h_scratch[:half] = h_a
            h_scratch[half:] = h_b
        else:
            def step(i, h):                       # h: (Bt, H) f32 carry
                pre = p_ref[i] + jnp.dot(h.astype(jnp.bfloat16), whh_ref[i],
                                         preferred_element_type=jnp.float32)
                h_new = jnp.tanh(pre)
                return jnp.where(chunk_start + i < lens, h_new, h)

            h_scratch[...] = lax.fori_loop(0, tc, step, h_scratch[...],
                                           unroll=unroll_n)

    @pl.when(c == pl.num_programs(0) - 1)
    def _():
        out_ref[...] = (jnp.dot(h_scratch[...], wlin_ref[...],
                                preferred_element_type=jnp.float32)
                        + blin_ref[...]).astype(out_ref.dtype)


def _pick_tc(T, H, B_pad, target_bytes=8 << 20):
    """Largest time-chunk whose per-chunk stream (W_hh bf16 + P f32) stays near
    `target_bytes` and divides T."""
    per_t = H * H * 2 + B_pad * H * 4
    tc = max(1, min(T, target_bytes // max(1, per_t)))
    while T % tc:
        tc -= 1
    return tc


def prepare_params(W_xh, W_hh, W_lin, b_lin):
    """ONE-TIME parameter prep (do NOT redo per forward call):
    bf16 weight streams, right-multiply layouts."""
    O = W_lin.shape[0]
    return dict(
        W_xh_bf16=W_xh.astype(jnp.bfloat16),                              # (T, H, D)
        W_hh_T_bf16=jnp.transpose(W_hh, (0, 2, 1)).astype(jnp.bfloat16),  # (T, H, H)
        W_lin_T=jnp.transpose(W_lin, (1, 0)).astype(jnp.float32),         # (H, O)
        b_lin_2d=b_lin.reshape(1, O).astype(jnp.float32),                 # (1, O)
    )


def sequence_model_fixed_len(x, seq_lengths, params):
    """
    x:           (T, B, D_in)  float32, time-major padded input
    seq_lengths: (B,)          int32 valid lengths (clamped to T)
    params:      output of prepare_params()
    returns:     (B, O)        float32
    """
    T, B, _ = x.shape
    W_xh_bf16 = params['W_xh_bf16']
    W_hh_T = params['W_hh_T_bf16']
    W_lin_T = params['W_lin_T']
    b_lin_2d = params['b_lin_2d']
    H = W_xh_bf16.shape[1]
    O = W_lin_T.shape[1]

    # ---- hoisted fully-parallel input projection (bf16 operands, f32 accumulate) ----
    # P[t, b, h] = sum_d W_xh[t, h, d] * x[t, b, d]
    P = jnp.einsum('tbd,thd->tbh', x.astype(jnp.bfloat16), W_xh_bf16,
                   preferred_element_type=jnp.float32)          # (T, B, H) f32

    # ---- pad batch to a sublane multiple; padded rows get length 0 ----
    B_pad = max(8, ((B + 7) // 8) * 8)
    lens = jnp.minimum(seq_lengths.astype(jnp.int32), T)
    if B_pad != B:
        P = jnp.pad(P, ((0, 0), (0, B_pad - B), (0, 0)))
        lens = jnp.pad(lens, (0, B_pad - B))
    lens_2d = lens.reshape(B_pad, 1)
    maxlen = jnp.max(lens).reshape(1).astype(jnp.int32)         # scalar prefetch

    # ---- tiling / VMEM budget ----
    Tc = _pick_tc(T, H, B_pad)
    n_chunks = T // Tc
    whh_blk = Tc * H * H * 2
    p_blk = Tc * B_pad * H * 4
    static_bytes = B_pad * H * 4 + H * O * 4 + O * 4 + B_pad * O * 4 + B_pad * 4
    vmem_need = 2 * (whh_blk + p_blk) + static_bytes            # double-buffered streams
    vmem_limit = int(min(max(int(vmem_need * 1.5) + (4 << 20), 32 << 20), 48 << 20))

    grid_spec = pltpu.PrefetchScalarGridSpec(
        num_scalar_prefetch=1,                                  # maxlen -> SMEM
        grid=(n_chunks,),
        in_specs=[
            pl.BlockSpec((B_pad, 1), lambda c, ml: (0, 0)),          # seq lengths
            pl.BlockSpec((Tc, B_pad, H), lambda c, ml: (c, 0, 0)),   # P chunk (f32)
            pl.BlockSpec((Tc, H, H), lambda c, ml: (c, 0, 0)),       # W_hh chunk (bf16)
            pl.BlockSpec((H, O), lambda c, ml: (0, 0)),              # W_lin_T
            pl.BlockSpec((1, O), lambda c, ml: (0, 0)),              # b_lin
        ],
        out_specs=pl.BlockSpec((B_pad, O), lambda c, ml: (0, 0)),
        scratch_shapes=[pltpu.VMEM((B_pad, H), jnp.float32)],        # hidden state
    )

    out = pl.pallas_call(
        _rnn_seq_kernel,
        out_shape=jax.ShapeDtypeStruct((B_pad, O), jnp.float32),
        grid_spec=grid_spec,
        compiler_params=pltpu.CompilerParams(
            dimension_semantics=("arbitrary",),
            vmem_limit_bytes=vmem_limit),
    )(maxlen, lens_2d, P, W_hh_T, W_lin_T, b_lin_2d)

    return out[:B]


def _reference(x, seq_lengths, W_xh, W_hh, W_lin, b_lin):
    """Pure-numpy transliteration of the PyTorch forward (per-batch loop)."""
    x = np.asarray(x); W_xh = np.asarray(W_xh); W_hh = np.asarray(W_hh)
    W_lin = np.asarray(W_lin); b_lin = np.asarray(b_lin)
    T, B, _ = x.shape
    H = W_xh.shape[1]
    last_hidden = np.zeros((B, H), dtype=np.float32)
    for b in range(B):
        hidden = np.zeros((H,), dtype=np.float32)
        L = min(int(seq_lengths[b]), T)
        for t in range(L):
            hidden = np.tanh(W_xh[t] @ x[t, b] + W_hh[t] @ hidden)
        last_hidden[b] = hidden
    return last_hidden @ W_lin.T + b_lin


if __name__ == "__main__":
    # small shapes consistent with the module (hidden_size=64, output_size=1)
    seq_len = 8          # number of RNNLayer instances / max timesteps
    batch = 32
    input_size = 8
    hidden_size = 64
    output_size = 1

    key = jax.random.PRNGKey(0)
    k_x, k_wxh, k_whh, k_wl, k_bl, _ = jax.random.split(key, 6)

    # deterministic parameter init (matches __init__ shapes; randn * 0.01 style)
    W_xh = jax.random.normal(k_wxh, (seq_len, hidden_size, input_size), jnp.float32) * 0.01
    W_hh = jax.random.normal(k_whh, (seq_len, hidden_size, hidden_size), jnp.float32) * 0.01
    W_lin = jax.random.normal(k_wl, (output_size, hidden_size), jnp.float32) * 0.1
    b_lin = jax.random.normal(k_bl, (output_size,), jnp.float32) * 0.1

    # padded time-major input + per-batch lengths (variable lengths, like the list input)
    x = jax.random.normal(k_x, (seq_len, batch, input_size), jnp.float32)
    seq_lengths = jnp.array([(i % seq_len) + 1 for i in range(batch)], dtype=jnp.int32)

    # one-time parameter prep (transpose + bf16 cast NOT repeated per call)
    params = prepare_params(W_xh, W_hh, W_lin, b_lin)

    out = sequence_model_fixed_len(x, seq_lengths, params)
    out = jax.block_until_ready(out)

    ref = _reference(x, np.asarray(seq_lengths), W_xh, W_hh, W_lin, b_lin)
    # bf16 W_hh / W_xh streams -> loosened tolerances vs the f32 reference
    np.testing.assert_allclose(np.asarray(out), ref, rtol=1e-2, atol=2e-3)

    print("KERNEL_OK")
</pallas_src>

<mosaic_0001>
module attributes {stable_mosaic.version = 11 : i64} {
  func.func @_rnn_seq_kernel(%arg0: i32, %arg1: memref<1xi32, #tpu.memory_space<smem>>, %arg2: memref<32x1xi32, #tpu.memory_space<vmem>>, %arg3: memref<8x32x64xf32, #tpu.memory_space<vmem>>, %arg4: memref<8x64x64xbf16, #tpu.memory_space<vmem>>, %arg5: memref<64x1xf32, #tpu.memory_space<vmem>>, %arg6: memref<1x1xf32, #tpu.memory_space<vmem>>, %arg7: memref<32x1xf32, #tpu.memory_space<vmem>>, %arg8: memref<32x64xf32, #tpu.memory_space<vmem>>) attributes {dimension_semantics = [#tpu.dimension_semantics<arbitrary>], iteration_bounds = array<i64: 1>, scalar_prefetch = 1 : i64, scratch_operands = 1 : i64, tpu.core_type = #tpu.core_type<tc>, window_params = [{pipeline_mode = #tpu.pipeline_mode<synchronous>, transform_indices = @transform_0, window_bounds = array<i64: 32, 1>}, {transform_indices = @transform_1, window_bounds = array<i64: 8, 32, 64>}, {transform_indices = @transform_2, window_bounds = array<i64: 8, 64, 64>}, {pipeline_mode = #tpu.pipeline_mode<synchronous>, transform_indices = @transform_3, window_bounds = array<i64: 64, 1>}, {pipeline_mode = #tpu.pipeline_mode<synchronous>, transform_indices = @transform_4, window_bounds = array<i64: 1, 1>}, {pipeline_mode = #tpu.pipeline_mode<synchronous>, transform_indices = @transform_5, window_bounds = array<i64: 32, 1>}]} {
    %c8_i32 = arith.constant 8 : i32
    %0 = arith.muli %arg0, %c8_i32 : i32
    %c0_i32 = arith.constant 0 : i32
    %1 = arith.cmpi eq, %arg0, %c0_i32 : i32
    %2 = arith.extui %1 : i1 to i32
    %c0_i32_0 = arith.constant 0 : i32
    %3 = arith.cmpi ne, %2, %c0_i32_0 : i32
    scf.if %3 {
      %cst = arith.constant 0.000000e+00 : f32
      %11 = vector.broadcast %cst : f32 to vector<32x64xf32>
      %c0_4 = arith.constant 0 : index
      %c0_5 = arith.constant 0 : index
      %12 = vector.load %arg8[%c0_4, %c0_5] : memref<32x64xf32, #tpu.memory_space<vmem>>, vector<32x64xf32>
      tpu.vector_store %arg8[%c0_4, %c0_5], %11 {strides = array<i32>} : memref<32x64xf32, #tpu.memory_space<vmem>>, vector<32x64xf32>,
    } else {
    }
    %c0 = arith.constant 0 : index
    %4 = memref.load %arg1[%c0] : memref<1xi32, #tpu.memory_space<smem>>
    %5 = arith.cmpi slt, %0, %4 : i32
    %6 = arith.extui %5 : i1 to i32
    %c0_i32_1 = arith.constant 0 : i32
    %7 = arith.cmpi ne, %6, %c0_i32_1 : i32
    scf.if %7 {
      %c0_4 = arith.constant 0 : index
      %c0_5 = arith.constant 0 : index
      %11 = vector.load %arg2[%c0_4, %c0_5] : memref<32x1xi32, #tpu.memory_space<vmem>>, vector<32x1xi32>
      %12 = vector.extract_strided_slice %11 {offsets = [0, 0], sizes = [16, 1], strides = [1, 1]} : vector<32x1xi32> to vector<16x1xi32>
      %13 = vector.extract_strided_slice %11 {offsets = [16, 0], sizes = [16, 1], strides = [1, 1]} : vector<32x1xi32> to vector<16x1xi32>
      %c0_6 = arith.constant 0 : index
      %c0_7 = arith.constant 0 : index
      %14 = vector.load %arg8[%c0_6, %c0_7] : memref<32x64xf32, #tpu.memory_space<vmem>>, vector<16x64xf32>
      %c16 = arith.constant 16 : index
      %c0_8 = arith.constant 0 : index
      %15 = vector.load %arg8[%c16, %c0_8] : memref<32x64xf32, #tpu.memory_space<vmem>>, vector<16x64xf32>
      %c0_i32_9 = arith.constant 0 : i32
      %16 = arith.addi %0, %c0_i32_9 : i32
      %17 = arith.index_cast %c0_i32_9 : i32 to index
      %c0_10 = arith.constant 0 : index
      %c0_11 = arith.constant 0 : index
      %18 = vector.load %arg4[%17, %c0_10, %c0_11] : memref<8x64x64xbf16, #tpu.memory_space<vmem>>, vector<1x64x64xbf16>
      %19 = vector.shape_cast %18 : vector<1x64x64xbf16> to vector<64x64xbf16>
      %20 = arith.index_cast %c0_i32_9 : i32 to index
      %c0_12 = arith.constant 0 : index
      %c0_13 = arith.constant 0 : index
      %21 = vector.load %arg3[%20, %c0_12, %c0_13] : memref<8x32x64xf32, #tpu.memory_space<vmem>>, vector<1x32x64xf32>
      %22 = vector.shape_cast %21 : vector<1x32x64xf32> to vector<32x64xf32>
      %23 = vector.extract_strided_slice %22 {offsets = [0, 0], sizes = [16, 64], strides = [1, 1]} : vector<32x64xf32> to vector<16x64xf32>
      %24 = arith.truncf %14 : vector<16x64xf32> to vector<16x64xbf16>
      %cst = arith.constant dense<0.000000e+00> : vector<16x64xf32>
      %25 = tpu.matmul %24, %19, %cst {dimension_numbers = #tpu.dot_dimension_numbers<[1], [0], [0], [1], [0, 0, 1, 1], [], []>} : vector<16x64xbf16>, vector<64x64xbf16>, vector<16x64xf32> -> vector<16x64xf32>
      %26 = arith.addf %23, %25 : vector<16x64xf32>
      %27 = vector.extract_strided_slice %22 {offsets = [16, 0], sizes = [16, 64], strides = [1, 1]} : vector<32x64xf32> to vector<16x64xf32>
      %28 = arith.truncf %15 : vector<16x64xf32> to vector<16x64xbf16>
      %cst_14 = arith.constant dense<0.000000e+00> : vector<16x64xf32>
      %29 = tpu.matmul %28, %19, %cst_14 {dimension_numbers = #tpu.dot_dimension_numbers<[1], [0], [0], [1], [0, 0, 1, 1], [], []>} : vector<16x64xbf16>, vector<64x64xbf16>, vector<16x64xf32> -> vector<16x64xf32>
      %30 = arith.addf %27, %29 : vector<16x64xf32>
      %31 = math.tanh %26 : vector<16x64xf32>
      %32 = math.tanh %30 : vector<16x64xf32>
      %33 = vector.broadcast %16 : i32 to vector<16x1xi32>
      %34 = arith.cmpi slt, %33, %12 : vector<16x1xi32>
      %35 = vector.shape_cast %34 : vector<16x1xi1> to vector<16x1xi1>
      %36 = vector.broadcast %35 : vector<16x1xi1> to vector<16x64xi1>
      %37 = arith.select %36, %31, %14 : vector<16x64xi1>, vector<16x64xf32>
      %38 = vector.broadcast %16 : i32 to vector<16x1xi32>
      %39 = arith.cmpi slt, %38, %13 : vector<16x1xi32>
      %40 = vector.shape_cast %39 : vector<16x1xi1> to vector<16x1xi1>
      %41 = vector.broadcast %40 : vector<16x1xi1> to vector<16x64xi1>
      %42 = arith.select %41, %32, %15 : vector<16x64xi1>, vector<16x64xf32>
      %c1_i32 = arith.constant 1 : i32
      %43 = arith.addi %0, %c1_i32 : i32
      %44 = arith.index_cast %c1_i32 : i32 to index
      %c0_15 = arith.constant 0 : index
      %c0_16 = arith.constant 0 : index
      %45 = vector.load %arg4[%44, %c0_15, %c0_16] : memref<8x64x64xbf16, #tpu.memory_space<vmem>>, vector<1x64x64xbf16>
      %46 = vector.shape_cast %45 : vector<1x64x64xbf16> to vector<64x64xbf16>
      %47 = arith.index_cast %c1_i32 : i32 to index
      %c0_17 = arith.constant 0 : index
      %c0_18 = arith.constant 0 : index
      %48 = vector.load %arg3[%47, %c0_17, %c0_18] : memref<8x32x64xf32, #tpu.memory_space<vmem>>, vector<1x32x64xf32>
      %49 = vector.shape_cast %48 : vector<1x32x64xf32> to vector<32x64xf32>
      %50 = vector.extract_strided_slice %49 {offsets = [0, 0], sizes = [16, 64], strides = [1, 1]} : vector<32x64xf32> to vector<16x64xf32>
      %51 = arith.truncf %37 : vector<16x64xf32> to vector<16x64xbf16>
      %cst_19 = arith.constant dense<0.000000e+00> : vector<16x64xf32>
      %52 = tpu.matmul %51, %46, %cst_19 {dimension_numbers = #tpu.dot_dimension_numbers<[1], [0], [0], [1], [0, 0, 1, 1], [], []>} : vector<16x64xbf16>, vector<64x64xbf16>, vector<16x64xf32> -> vector<16x64xf32>
      %53 = arith.addf %50, %52 : vector<16x64xf32>
      %54 = vector.extract_strided_slice %49 {offsets = [16, 0], sizes = [16, 64], strides = [1, 1]} : vector<32x64xf32> to vector<16x64xf32>
      %55 = arith.truncf %42 : vector<16x64xf32> to vector<16x64xbf16>
      %cst_20 = arith.constant dense<0.000000e+00> : vector<16x64xf32>
      %56 = tpu.matmul %55, %46, %cst_20 {dimension_numbers = #tpu.dot_dimension_numbers<[1], [0], [0], [1], [0, 0, 1, 1], [], []>} : vector<16x64xbf16>, vector<64x64xbf16>, vector<16x64xf32> -> vector<16x64xf32>
      %57 = arith.addf %54, %56 : vector<16x64xf32>
      %58 = math.tanh %53 : vector<16x64xf32>
      %59 = math.tanh %57 : vector<16x64xf32>
      %60 = vector.broadcast %43 : i32 to vector<16x1xi32>
      %61 = arith.cmpi slt, %60, %12 : vector<16x1xi32>
      %62 = vector.shape_cast %61 : vector<16x1xi1> to vector<16x1xi1>
      %63 = vector.broadcast %62 : vector<16x1xi1> to vector<16x64xi1>
      %64 = arith.select %63, %58, %37 : vector<16x64xi1>, vector<16x64xf32>
      %65 = vector.broadcast %43 : i32 to vector<16x1xi32>
      %66 = arith.cmpi slt, %65, %13 : vector<16x1xi32>
      %67 = vector.shape_cast %66 : vector<16x1xi1> to vector<16x1xi1>
      %68 = vector.broadcast %67 : vector<16x1xi1> to vector<16x64xi1>
      %69 = arith.select %68, %59, %42 : vector<16x64xi1>, vector<16x64xf32>
      %c2_i32 = arith.constant 2 : i32
      %70 = arith.addi %0, %c2_i32 : i32
      %71 = arith.index_cast %c2_i32 : i32 to index
      %c0_21 = arith.constant 0 : index
      %c0_22 = arith.constant 0 : index
      %72 = vector.load %arg4[%71, %c0_21, %c0_22] : memref<8x64x64xbf16, #tpu.memory_space<vmem>>, vector<1x64x64xbf16>
      %73 = vector.shape_cast %72 : vector<1x64x64xbf16> to vector<64x64xbf16>
      %74 = arith.index_cast %c2_i32 : i32 to index
      %c0_23 = arith.constant 0 : index
      %c0_24 = arith.constant 0 : index
      %75 = vector.load %arg3[%74, %c0_23, %c0_24] : memref<8x32x64xf32, #tpu.memory_space<vmem>>, vector<1x32x64xf32>
      %76 = vector.shape_cast %75 : vector<1x32x64xf32> to vector<32x64xf32>
      %77 = vector.extract_strided_slice %76 {offsets = [0, 0], sizes = [16, 64], strides = [1, 1]} : vector<32x64xf32> to vector<16x64xf32>
      %78 = arith.truncf %64 : vector<16x64xf32> to vector<16x64xbf16>
      %cst_25 = arith.constant dense<0.000000e+00> : vector<16x64xf32>
      %79 = tpu.matmul %78, %73, %cst_25 {dimension_numbers = #tpu.dot_dimension_numbers<[1], [0], [0], [1], [0, 0, 1, 1], [], []>} : vector<16x64xbf16>, vector<64x64xbf16>, vector<16x64xf32> -> vector<16x64xf32>
      %80 = arith.addf %77, %79 : vector<16x64xf32>
      %81 = vector.extract_strided_slice %76 {offsets = [16, 0], sizes = [16, 64], strides = [1, 1]} : vector<32x64xf32> to vector<16x64xf32>
      %82 = arith.truncf %69 : vector<16x64xf32> to vector<16x64xbf16>
      %cst_26 = arith.constant dense<0.000000e+00> : vector<16x64xf32>
      %83 = tpu.matmul %82, %73, %cst_26 {dimension_numbers = #tpu.dot_dimension_numbers<[1], [0], [0], [1], [0, 0, 1, 1], [], []>} : vector<16x64xbf16>, vector<64x64xbf16>, vector<16x64xf32> -> vector<16x64xf32>
      %84 = arith.addf %81, %83 : vector<16x64xf32>
      %85 = math.tanh %80 : vector<16x64xf32>
      %86 = math.tanh %84 : vector<16x64xf32>
      %87 = vector.broadcast %70 : i32 to vector<16x1xi32>
      %88 = arith.cmpi slt, %87, %12 : vector<16x1xi32>
      %89 = vector.shape_cast %88 : vector<16x1xi1> to vector<16x1xi1>
      %90 = vector.broadcast %89 : vector<16x1xi1> to vector<16x64xi1>
      %91 = arith.select %90, %85, %64 : vector<16x64xi1>, vector<16x64xf32>
      %92 = vector.broadcast %70 : i32 to vector<16x1xi32>
      %93 = arith.cmpi slt, %92, %13 : vector<16x1xi32>
      %94 = vector.shape_cast %93 : vector<16x1xi1> to vector<16x1xi1>
      %95 = vector.broadcast %94 : vector<16x1xi1> to vector<16x64xi1>
      %96 = arith.select %95, %86, %69 : vector<16x64xi1>, vector<16x64xf32>
      %c3_i32 = arith.constant 3 : i32
      %97 = arith.addi %0, %c3_i32 : i32
      %98 = arith.index_cast %c3_i32 : i32 to index
      %c0_27 = arith.constant 0 : index
      %c0_28 = arith.constant 0 : index
      %99 = vector.load %arg4[%98, %c0_27, %c0_28] : memref<8x64x64xbf16, #tpu.memory_space<vmem>>, vector<1x64x64xbf16>
      %100 = vector.shape_cast %99 : vector<1x64x64xbf16> to vector<64x64xbf16>
      %101 = arith.index_cast %c3_i32 : i32 to index
      %c0_29 = arith.constant 0 : index
      %c0_30 = arith.constant 0 : index
      %102 = vector.load %arg3[%101, %c0_29, %c0_30] : memref<8x32x64xf32, #tpu.memory_space<vmem>>, vector<1x32x64xf32>
      %103 = vector.shape_cast %102 : vector<1x32x64xf32> to vector<32x64xf32>
      %104 = vector.extract_strided_slice %103 {offsets = [0, 0], sizes = [16, 64], strides = [1, 1]} : vector<32x64xf32> to vector<16x64xf32>
      %105 = arith.truncf %91 : vector<16x64xf32> to vector<16x64xbf16>
      %cst_31 = arith.constant dense<0.000000e+00> : vector<16x64xf32>
      %106 = tpu.matmul %105, %100, %cst_31 {dimension_numbers = #tpu.dot_dimension_numbers<[1], [0], [0], [1], [0, 0, 1, 1], [], []>} : vector<16x64xbf16>, vector<64x64xbf16>, vector<16x64xf32> -> vector<16x64xf32>
      %107 = arith.addf %104, %106 : vector<16x64xf32>
      %108 = vector.extract_strided_slice %103 {offsets = [16, 0], sizes = [16, 64], strides = [1, 1]} : vector<32x64xf32> to vector<16x64xf32>
      %109 = arith.truncf %96 : vector<16x64xf32> to vector<16x64xbf16>
      %cst_32 = arith.constant dense<0.000000e+00> : vector<16x64xf32>
      %110 = tpu.matmul %109, %100, %cst_32 {dimension_numbers = #tpu.dot_dimension_numbers<[1], [0], [0], [1], [0, 0, 1, 1], [], []>} : vector<16x64xbf16>, vector<64x64xbf16>, vector<16x64xf32> -> vector<16x64xf32>
      %111 = arith.addf %108, %110 : vector<16x64xf32>
      %112 = math.tanh %107 : vector<16x64xf32>
      %113 = math.tanh %111 : vector<16x64xf32>
      %114 = vector.broadcast %97 : i32 to vector<16x1xi32>
      %115 = arith.cmpi slt, %114, %12 : vector<16x1xi32>
      %116 = vector.shape_cast %115 : vector<16x1xi1> to vector<16x1xi1>
      %117 = vector.broadcast %116 : vector<16x1xi1> to vector<16x64xi1>
      %118 = arith.select %117, %112, %91 : vector<16x64xi1>, vector<16x64xf32>
      %119 = vector.broadcast %97 : i32 to vector<16x1xi32>
      %120 = arith.cmpi slt, %119, %13 : vector<16x1xi32>
      %121 = vector.shape_cast %120 : vector<16x1xi1> to vector<16x1xi1>
      %122 = vector.broadcast %121 : vector<16x1xi1> to vector<16x64xi1>
      %123 = arith.select %122, %113, %96 : vector<16x64xi1>, vector<16x64xf32>
      %c4_i32 = arith.constant 4 : i32
      %124 = arith.addi %0, %c4_i32 : i32
      %125 = arith.index_cast %c4_i32 : i32 to index
      %c0_33 = arith.constant 0 : index
      %c0_34 = arith.constant 0 : index
      %126 = vector.load %arg4[%125, %c0_33, %c0_34] : memref<8x64x64xbf16, #tpu.memory_space<vmem>>, vector<1x64x64xbf16>
      %127 = vector.shape_cast %126 : vector<1x64x64xbf16> to vector<64x64xbf16>
      %128 = arith.index_cast %c4_i32 : i32 to index
      %c0_35 = arith.constant 0 : index
      %c0_36 = arith.constant 0 : index
      %129 = vector.load %arg3[%128, %c0_35, %c0_36] : memref<8x32x64xf32, #tpu.memory_space<vmem>>, vector<1x32x64xf32>
      %130 = vector.shape_cast %129 : vector<1x32x64xf32> to vector<32x64xf32>
      %131 = vector.extract_strided_slice %130 {offsets = [0, 0], sizes = [16, 64], strides = [1, 1]} : vector<32x64xf32> to vector<16x64xf32>
      %132 = arith.truncf %118 : vector<16x64xf32> to vector<16x64xbf16>
      %cst_37 = arith.constant dense<0.000000e+00> : vector<16x64xf32>
      %133 = tpu.matmul %132, %127, %cst_37 {dimension_numbers = #tpu.dot_dimension_numbers<[1], [0], [0], [1], [0, 0, 1, 1], [], []>} : vector<16x64xbf16>, vector<64x64xbf16>, vector<16x64xf32> -> vector<16x64xf32>
      %134 = arith.addf %131, %133 : vector<16x64xf32>
      %135 = vector.extract_strided_slice %130 {offsets = [16, 0], sizes = [16, 64], strides = [1, 1]} : vector<32x64xf32> to vector<16x64xf32>
      %136 = arith.truncf %123 : vector<16x64xf32> to vector<16x64xbf16>
      %cst_38 = arith.constant dense<0.000000e+00> : vector<16x64xf32>
      %137 = tpu.matmul %136, %127, %cst_38 {dimension_numbers = #tpu.dot_dimension_numbers<[1], [0], [0], [1], [0, 0, 1, 1], [], []>} : vector<16x64xbf16>, vector<64x64xbf16>, vector<16x64xf32> -> vector<16x64xf32>
      %138 = arith.addf %135, %137 : vector<16x64xf32>
      %139 = math.tanh %134 : vector<16x64xf32>
      %140 = math.tanh %138 : vector<16x64xf32>
      %141 = vector.broadcast %124 : i32 to vector<16x1xi32>
      %142 = arith.cmpi slt, %141, %12 : vector<16x1xi32>
      %143 = vector.shape_cast %142 : vector<16x1xi1> to vector<16x1xi1>
      %144 = vector.broadcast %143 : vector<16x1xi1> to vector<16x64xi1>
      %145 = arith.select %144, %139, %118 : vector<16x64xi1>, vector<16x64xf32>
      %146 = vector.broadcast %124 : i32 to vector<16x1xi32>
      %147 = arith.cmpi slt, %146, %13 : vector<16x1xi32>
      %148 = vector.shape_cast %147 : vector<16x1xi1> to vector<16x1xi1>
      %149 = vector.broadcast %148 : vector<16x1xi1> to vector<16x64xi1>
      %150 = arith.select %149, %140, %123 : vector<16x64xi1>, vector<16x64xf32>
      %c5_i32 = arith.constant 5 : i32
      %151 = arith.addi %0, %c5_i32 : i32
      %152 = arith.index_cast %c5_i32 : i32 to index
      %c0_39 = arith.constant 0 : index
      %c0_40 = arith.constant 0 : index
      %153 = vector.load %arg4[%152, %c0_39, %c0_40] : memref<8x64x64xbf16, #tpu.memory_space<vmem>>, vector<1x64x64xbf16>
      %154 = vector.shape_cast %153 : vector<1x64x64xbf16> to vector<64x64xbf16>
      %155 = arith.index_cast %c5_i32 : i32 to index
      %c0_41 = arith.constant 0 : index
      %c0_42 = arith.constant 0 : index
      %156 = vector.load %arg3[%155, %c0_41, %c0_42] : memref<8x32x64xf32, #tpu.memory_space<vmem>>, vector<1x32x64xf32>
      %157 = vector.shape_cast %156 : vector<1x32x64xf32> to vector<32x64xf32>
      %158 = vector.extract_strided_slice %157 {offsets = [0, 0], sizes = [16, 64], strides = [1, 1]} : vector<32x64xf32> to vector<16x64xf32>
      %159 = arith.truncf %145 : vector<16x64xf32> to vector<16x64xbf16>
      %cst_43 = arith.constant dense<0.000000e+00> : vector<16x64xf32>
      %160 = tpu.matmul %159, %154, %cst_43 {dimension_numbers = #tpu.dot_dimension_numbers<[1], [0], [0], [1], [0, 0, 1, 1], [], []>} : vector<16x64xbf16>, vector<64x64xbf16>, vector<16x64xf32> -> vector<16x64xf32>
      %161 = arith.addf %158, %160 : vector<16x64xf32>
      %162 = vector.extract_strided_slice %157 {offsets = [16, 0], sizes = [16, 64], strides = [1, 1]} : vector<32x64xf32> to vector<16x64xf32>
      %163 = arith.truncf %150 : vector<16x64xf32> to vector<16x64xbf16>
      %cst_44 = arith.constant dense<0.000000e+00> : vector<16x64xf32>
      %164 = tpu.matmul %163, %154, %cst_44 {dimension_numbers = #tpu.dot_dimension_numbers<[1], [0], [0], [1], [0, 0, 1, 1], [], []>} : vector<16x64xbf16>, vector<64x64xbf16>, vector<16x64xf32> -> vector<16x64xf32>
      %165 = arith.addf %162, %164 : vector<16x64xf32>
      %166 = math.tanh %161 : vector<16x64xf32>
      %167 = math.tanh %165 : vector<16x64xf32>
      %168 = vector.broadcast %151 : i32 to vector<16x1xi32>
      %169 = arith.cmpi slt, %168, %12 : vector<16x1xi32>
      %170 = vector.shape_cast %169 : vector<16x1xi1> to vector<16x1xi1>
      %171 = vector.broadcast %170 : vector<16x1xi1> to vector<16x64xi1>
      %172 = arith.select %171, %166, %145 : vector<16x64xi1>, vector<16x64xf32>
      %173 = vector.broadcast %151 : i32 to vector<16x1xi32>
      %174 = arith.cmpi slt, %173, %13 : vector<16x1xi32>
      %175 = vector.shape_cast %174 : vector<16x1xi1> to vector<16x1xi1>
      %176 = vector.broadcast %175 : vector<16x1xi1> to vector<16x64xi1>
      %177 = arith.select %176, %167, %150 : vector<16x64xi1>, vector<16x64xf32>
      %c6_i32 = arith.constant 6 : i32
      %178 = arith.addi %0, %c6_i32 : i32
      %179 = arith.index_cast %c6_i32 : i32 to index
      %c0_45 = arith.constant 0 : index
      %c0_46 = arith.constant 0 : index
      %180 = vector.load %arg4[%179, %c0_45, %c0_46] : memref<8x64x64xbf16, #tpu.memory_space<vmem>>, vector<1x64x64xbf16>
      %181 = vector.shape_cast %180 : vector<1x64x64xbf16> to vector<64x64xbf16>
      %182 = arith.index_cast %c6_i32 : i32 to index
      %c0_47 = arith.constant 0 : index
      %c0_48 = arith.constant 0 : index
      %183 = vector.load %arg3[%182, %c0_47, %c0_48] : memref<8x32x64xf32, #tpu.memory_space<vmem>>, vector<1x32x64xf32>
      %184 = vector.shape_cast %183 : vector<1x32x64xf32> to vector<32x64xf32>
      %185 = vector.extract_strided_slice %184 {offsets = [0, 0], sizes = [16, 64], strides = [1, 1]} : vector<32x64xf32> to vector<16x64xf32>
      %186 = arith.truncf %172 : vector<16x64xf32> to vector<16x64xbf16>
      %cst_49 = arith.constant dense<0.000000e+00> : vector<16x64xf32>
      %187 = tpu.matmul %186, %181, %cst_49 {dimension_numbers = #tpu.dot_dimension_numbers<[1], [0], [0], [1], [0, 0, 1, 1], [], []>} : vector<16x64xbf16>, vector<64x64xbf16>, vector<16x64xf32> -> vector<16x64xf32>
      %188 = arith.addf %185, %187 : vector<16x64xf32>
      %189 = vector.extract_strided_slice %184 {offsets = [16, 0], sizes = [16, 64], strides = [1, 1]} : vector<32x64xf32> to vector<16x64xf32>
      %190 = arith.truncf %177 : vector<16x64xf32> to vector<16x64xbf16>
      %cst_50 = arith.constant dense<0.000000e+00> : vector<16x64xf32>
      %191 = tpu.matmul %190, %181, %cst_50 {dimension_numbers = #tpu.dot_dimension_numbers<[1], [0], [0], [1], [0, 0, 1, 1], [], []>} : vector<16x64xbf16>, vector<64x64xbf16>, vector<16x64xf32> -> vector<16x64xf32>
      %192 = arith.addf %189, %191 : vector<16x64xf32>
      %193 = math.tanh %188 : vector<16x64xf32>
      %194 = math.tanh %192 : vector<16x64xf32>
      %195 = vector.broadcast %178 : i32 to vector<16x1xi32>
      %196 = arith.cmpi slt, %195, %12 : vector<16x1xi32>
      %197 = vector.shape_cast %196 : vector<16x1xi1> to vector<16x1xi1>
      %198 = vector.broadcast %197 : vector<16x1xi1> to vector<16x64xi1>
      %199 = arith.select %198, %193, %172 : vector<16x64xi1>, vector<16x64xf32>
      %200 = vector.broadcast %178 : i32 to vector<16x1xi32>
      %201 = arith.cmpi slt, %200, %13 : vector<16x1xi32>
      %202 = vector.shape_cast %201 : vector<16x1xi1> to vector<16x1xi1>
      %203 = vector.broadcast %202 : vector<16x1xi1> to vector<16x64xi1>
      %204 = arith.select %203, %194, %177 : vector<16x64xi1>, vector<16x64xf32>
      %c7_i32 = arith.constant 7 : i32
      %205 = arith.addi %0, %c7_i32 : i32
      %206 = arith.index_cast %c7_i32 : i32 to index
      %c0_51 = arith.constant 0 : index
      %c0_52 = arith.constant 0 : index
      %207 = vector.load %arg4[%206, %c0_51, %c0_52] : memref<8x64x64xbf16, #tpu.memory_space<vmem>>, vector<1x64x64xbf16>
      %208 = vector.shape_cast %207 : vector<1x64x64xbf16> to vector<64x64xbf16>
      %209 = arith.index_cast %c7_i32 : i32 to index
      %c0_53 = arith.constant 0 : index
      %c0_54 = arith.constant 0 : index
      %210 = vector.load %arg3[%209, %c0_53, %c0_54] : memref<8x32x64xf32, #tpu.memory_space<vmem>>, vector<1x32x64xf32>
      %211 = vector.shape_cast %210 : vector<1x32x64xf32> to vector<32x64xf32>
      %212 = vector.extract_strided_slice %211 {offsets = [0, 0], sizes = [16, 64], strides = [1, 1]} : vector<32x64xf32> to vector<16x64xf32>
      %213 = arith.truncf %199 : vector<16x64xf32> to vector<16x64xbf16>
      %cst_55 = arith.constant dense<0.000000e+00> : vector<16x64xf32>
      %214 = tpu.matmul %213, %208, %cst_55 {dimension_numbers = #tpu.dot_dimension_numbers<[1], [0], [0], [1], [0, 0, 1, 1], [], []>} : vector<16x64xbf16>, vector<64x64xbf16>, vector<16x64xf32> -> vector<16x64xf32>
      %215 = arith.addf %212, %214 : vector<16x64xf32>
      %216 = vector.extract_strided_slice %211 {offsets = [16, 0], sizes = [16, 64], strides = [1, 1]} : vector<32x64xf32> to vector<16x64xf32>
      %217 = arith.truncf %204 : vector<16x64xf32> to vector<16x64xbf16>
      %cst_56 = arith.constant dense<0.000000e+00> : vector<16x64xf32>
      %218 = tpu.matmul %217, %208, %cst_56 {dimension_numbers = #tpu.dot_dimension_numbers<[1], [0], [0], [1], [0, 0, 1, 1], [], []>} : vector<16x64xbf16>, vector<64x64xbf16>, vector<16x64xf32> -> vector<16x64xf32>
      %219 = arith.addf %216, %218 : vector<16x64xf32>
      %220 = math.tanh %215 : vector<16x64xf32>
      %221 = math.tanh %219 : vector<16x64xf32>
      %222 = vector.broadcast %205 : i32 to vector<16x1xi32>
      %223 = arith.cmpi slt, %222, %12 : vector<16x1xi32>
      %224 = vector.shape_cast %223 : vector<16x1xi1> to vector<16x1xi1>
      %225 = vector.broadcast %224 : vector<16x1xi1> to vector<16x64xi1>
      %226 = arith.select %225, %220, %199 : vector<16x64xi1>, vector<16x64xf32>
      %227 = vector.broadcast %205 : i32 to vector<16x1xi32>
      %228 = arith.cmpi slt, %227, %13 : vector<16x1xi32>
      %229 = vector.shape_cast %228 : vector<16x1xi1> to vector<16x1xi1>
      %230 = vector.broadcast %229 : vector<16x1xi1> to vector<16x64xi1>
      %231 = arith.select %230, %221, %204 : vector<16x64xi1>, vector<16x64xf32>
      %c8_i32_57 = arith.constant 8 : i32
      %c0_58 = arith.constant 0 : index
      %c0_59 = arith.constant 0 : index
      %232 = vector.load %arg8[%c0_58, %c0_59] : memref<32x64xf32, #tpu.memory_space<vmem>>, vector<16x64xf32>
      tpu.vector_store %arg8[%c0_58, %c0_59], %226 {strides = array<i32>} : memref<32x64xf32, #tpu.memory_space<vmem>>, vector<16x64xf32>,
      %c16_60 = arith.constant 16 : index
      %c0_61 = arith.constant 0 : index
      %233 = vector.load %arg8[%c16_60, %c0_61] : memref<32x64xf32, #tpu.memory_space<vmem>>, vector<16x64xf32>
      tpu.vector_store %arg8[%c16_60, %c0_61], %231 {strides = array<i32>} : memref<32x64xf32, #tpu.memory_space<vmem>>, vector<16x64xf32>,
    } else {
    }
    %c0_i32_2 = arith.constant 0 : i32
    %8 = arith.cmpi eq, %arg0, %c0_i32_2 : i32
    %9 = arith.extui %8 : i1 to i32
    %c0_i32_3 = arith.constant 0 : i32
    %10 = arith.cmpi ne, %9, %c0_i32_3 : i32
    scf.if %10 {
      %c0_4 = arith.constant 0 : index
      %c0_5 = arith.constant 0 : index
      %11 = vector.load %arg8[%c0_4, %c0_5] : memref<32x64xf32, #tpu.memory_space<vmem>>, vector<32x64xf32>
      %c0_6 = arith.constant 0 : index
      %c0_7 = arith.constant 0 : index
      %12 = vector.load %arg5[%c0_6, %c0_7] : memref<64x1xf32, #tpu.memory_space<vmem>>, vector<64x1xf32>
      %cst = arith.constant dense<0.000000e+00> : vector<32x1xf32>
      %13 = tpu.matmul %11, %12, %cst {dimension_numbers = #tpu.dot_dimension_numbers<[1], [0], [0], [1], [0, 0, 1, 1], [], []>} : vector<32x64xf32>, vector<64x1xf32>, vector<32x1xf32> -> vector<32x1xf32>
      %c0_8 = arith.constant 0 : index
      %c0_9 = arith.constant 0 : index
      %14 = vector.load %arg6[%c0_8, %c0_9] : memref<1x1xf32, #tpu.memory_space<vmem>>, vector<1x1xf32>
      %15 = vector.broadcast %14 : vector<1x1xf32> to vector<32x1xf32>
      %16 = arith.addf %13, %15 : vector<32x1xf32>
      %c0_10 = arith.constant 0 : index
      %c0_11 = arith.constant 0 : index
      %17 = vector.load %arg7[%c0_10, %c0_11] : memref<32x1xf32, #tpu.memory_space<vmem>>, vector<32x1xf32>
      tpu.vector_store %arg7[%c0_10, %c0_11], %16 {strides = array<i32>} : memref<32x1xf32, #tpu.memory_space<vmem>>, vector<32x1xf32>,
    } else {
    }
    return
  }
  func.func @transform_0(%arg0: i32, %arg1: memref<1xi32, #tpu.memory_space<smem>>) -> (i32, i32) {
    %c0_i32 = arith.constant 0 : i32
    %c0_i32_0 = arith.constant 0 : i32
    %c0_i32_1 = arith.constant 0 : i32
    return %c0_i32, %c0_i32_0 : i32, i32
  }
  func.func @transform_1(%arg0: i32, %arg1: memref<1xi32, #tpu.memory_space<smem>>) -> (i32, i32, i32) {
    %c0_i32 = arith.constant 0 : i32
    %c0_i32_0 = arith.constant 0 : i32
    %c0_i32_1 = arith.constant 0 : i32
    return %arg0, %c0_i32, %c0_i32_0 : i32, i32, i32
  }
  func.func @transform_2(%arg0: i32, %arg1: memref<1xi32, #tpu.memory_space<smem>>) -> (i32, i32, i32) {
    %c0_i32 = arith.constant 0 : i32
    %c0_i32_0 = arith.constant 0 : i32
    %c0_i32_1 = arith.constant 0 : i32
    return %arg0, %c0_i32, %c0_i32_0 : i32, i32, i32
  }
  func.func @transform_3(%arg0: i32, %arg1: memref<1xi32, #tpu.memory_space<smem>>) -> (i32, i32) {
    %c0_i32 = arith.constant 0 : i32
    %c0_i32_0 = arith.constant 0 : i32
    %c0_i32_1 = arith.constant 0 : i32
    return %c0_i32, %c0_i32_0 : i32, i32
  }
  func.func @transform_4(%arg0: i32, %arg1: memref<1xi32, #tpu.memory_space<smem>>) -> (i32, i32) {
    %c0_i32 = arith.constant 0 : i32
    %c0_i32_0 = arith.constant 0 : i32
    %c0_i32_1 = arith.constant 0 : i32
    return %c0_i32, %c0_i32_0 : i32, i32
  }
  func.func @transform_5(%arg0: i32, %arg1: memref<1xi32, #tpu.memory_space<smem>>) -> (i32, i32) {
    %c0_i32 = arith.constant 0 : i32
    %c0_i32_0 = arith.constant 0 : i32
    %c0_i32_1 = arith.constant 0 : i32
    return %c0_i32, %c0_i32_0 : i32, i32
  }
}

</mosaic_0001>

<llo_original>
// kernel: tpu_custom_call.1
$region0: #{tpu_custom_call.1}
  #allocation0 [shape = 'u32[]', space=smem, size = 0x4, offset = 0x4, fixed_abs, tag = 'smem constant byte address 0x4 - core index']
  #allocation1 [shape = 'u32[144,128]{1,0:T(1,128)}', space=vmem, size = 0x12000, scoped, tag = 'internal scratch']
  #allocation2 [shape = 'f32[32,64]{1,0:T(8,128)}', space=vmem, size = 0x4000, scoped, tag = 'scratch operand']
  #allocation3 [shape = 's32[1]{0}', space=sflag, size = 0x4, scoped, tag = 'scoped memory for tpu_custom_call.1']
  #allocation4 [shape = 's32[1]{0:T(128)S(6)}', space=smem, size = 0x200, scoped, tag = 'prefetched SMEM operand 0']
  #allocation5 [shape = 'f32[1,1]{1,0:T(1,128)S(1)}', space=vmem, size = 0x200, scoped, tag = 'scoped memory for tpu_custom_call.1']
  %s0 = inlined_call_operand.<no memory space> [shape: s32[1], index: 0, kind: input, shape index: {}]
  %s1 = inlined_call_operand.vmem [shape: s32[32,1], index: 1, kind: input, shape index: {}]
  %s2 = inlined_call_operand.hbm [shape: f32[8,32,64], index: 2, kind: input, shape index: {}]
  %s3 = inlined_call_operand.hbm [shape: bf16[8,64,64], index: 3, kind: input, shape index: {}]
  %s4 = inlined_call_operand.vmem [shape: f32[64,1], index: 4, kind: input, shape index: {}]
  %s5 = inlined_call_operand.<no memory space> [shape: f32[1,1], index: 5, kind: input, shape index: {}]
  %s6 = inlined_call_operand.vmem [shape: f32[32,1], index: 6, kind: output, shape index: {}]
  %s7 = sld [smem:[#allocation0]]
  $region50: #{tpu_custom_call.1} parent=0
    _
  %s9 = ssub.s32 1, %s7
  %s10 = scalar_select 0, %s9, %s7
  %11 = sst [smem:[#allocation4]] %s0
  %v12 = vstv %s5
  %13 = vst [vmem:[#allocation5] sm:$0x1] %v12
  $region1: #{tpu_custom_call.1} parent=0
    #allocation6 [shape = 'u8[131072]{0}', space=vmem, size = 0x20000, scoped, tag = 'input window, operand 2, single buffered']
    #allocation7 [shape = 's32[1]{0}', space=sflag, size = 0x4, scoped, tag = 'scoped memory for tpu_custom_call.1']
    #allocation8 [shape = 'u8[131072]{0}', space=vmem, size = 0x20000, scoped, tag = 'input window, operand 3, single buffered']
    #allocation9 [shape = 's32[1]{0}', space=sflag, size = 0x4, scoped, tag = 'scoped memory for tpu_custom_call.1']
    %14 = vsyncpa [#allocation7], 0
    %15 = vsyncpa [#allocation9], 0
    // Predicated region
    $region2: #{tpu_custom_call.1} parent=1 // pred_check
      _
    $region3: #{tpu_custom_call.1} parent=1 // pred_check_branch
      %17 = sbr.rel (0) target = $region5
    $region4: #{tpu_custom_call.1} parent=1 // pred_region
      _
    $region5: #{tpu_custom_call.1} parent=1 // pred_fallthru
      _
    // Predicated region
    $region6: #{tpu_custom_call.1} parent=1 // pred_check
      _
    $region7: #{tpu_custom_call.1} parent=1 // pred_check_branch
      %19 = sbr.rel (0) target = $region9
    $region8: #{tpu_custom_call.1} parent=1 // pred_region
      %s21 = ssub.s32 4096, 4096
      %22 = vsyncadd [#allocation7], %s21
      %s23 = sshll.u32 [#allocation6], 4
      %s24 = int_to_ptr.vmem [resolvable:$true] %s23
      %29 = dma.hbm_to_vmem [thread:$0]  %s2, 4096, %s24, [#allocation7], 128, 128, 8
    $region9: #{tpu_custom_call.1} parent=1 // pred_fallthru
      _
    // Predicated region
    $region10: #{tpu_custom_call.1} parent=1 // pred_check
      _
    $region11: #{tpu_custom_call.1} parent=1 // pred_check_branch
      %31 = sbr.rel (0) target = $region13
    $region12: #{tpu_custom_call.1} parent=1 // pred_region
      %s33 = ssub.s32 4096, 4096
      %34 = vsyncadd [#allocation9], %s33
      %s35 = sshll.u32 [#allocation8], 4
      %s36 = int_to_ptr.vmem [resolvable:$true] %s35
      %41 = dma.hbm_to_vmem [thread:$0]  %s3, 4096, %s36, [#allocation9], 64, 64, 4
    $region13: #{tpu_custom_call.1} parent=1 // pred_fallthru
      _
    // Predicated region
    $region14: #{tpu_custom_call.1} parent=1 // pred_check
      _
    $region15: #{tpu_custom_call.1} parent=1 // pred_check_branch
      %43 = sbr.rel (0) target = $region17
    $region16: #{tpu_custom_call.1} parent=1 // pred_region
      _
    $region17: #{tpu_custom_call.1} parent=1 // pred_fallthru
      _
    // Predicated region
    $region18: #{tpu_custom_call.1} parent=1 // pred_check
      _
    $region19: #{tpu_custom_call.1} parent=1 // pred_check_branch
      %45 = sbr.rel (0) target = $region21
    $region20: #{tpu_custom_call.1} parent=1 // pred_region
      _
    $region21: #{tpu_custom_call.1} parent=1 // pred_fallthru
      _
    // Predicated region
    $region22: #{tpu_custom_call.1} parent=1 // pred_check
      _
    $region23: #{tpu_custom_call.1} parent=1 // pred_check_branch
      %47 = sbr.rel (0) target = $region25
    $region24: #{tpu_custom_call.1} parent=1 // pred_region
      %48 = dma.done [#allocation7], 4096
    $region25: #{tpu_custom_call.1} parent=1 // pred_fallthru
      _
    // Predicated region
    $region26: #{tpu_custom_call.1} parent=1 // pred_check
      _
    $region27: #{tpu_custom_call.1} parent=1 // pred_check_branch
      %50 = sbr.rel (0) target = $region29
    $region28: #{tpu_custom_call.1} parent=1 // pred_region
      %51 = dma.done [#allocation9], 4096
    $region29: #{tpu_custom_call.1} parent=1 // pred_fallthru
      _
    %s53 = smul.u32 0, 8
    %p54 = scmp.eq.s32.totalorder 0, 0
    // Predicated region
    $region30: #{tpu_custom_call.1} parent=1 // pred_check
      %p55 = pneg %p54
    $region31: #{tpu_custom_call.1} parent=1 // pred_check_branch
      %57 = sbr.rel (%p55) target = $region33
    $region32: #{tpu_custom_call.1} parent=1 // pred_region
      %vm58 = vcmask 523264
      %59 = vst.msk [vmem:[#allocation2] sm:$0xff] %vm58, 0.0
      %60 = vst.msk [vmem:[#allocation2 + $0x8] sm:$0xff] %vm58, 0.0
      %61 = vst.msk [vmem:[#allocation2 + $0x10] sm:$0xff] %vm58, 0.0
      %62 = vst.msk [vmem:[#allocation2 + $0x18] sm:$0xff] %vm58, 0.0
    $region33: #{tpu_custom_call.1} parent=1 // pred_fallthru
      _
    %s63 = sld [smem:[#allocation4]]
    %p64 = scmp.lt.s32.totalorder %s53, %s63
    // Predicated region
    $region34: #{tpu_custom_call.1} parent=1 // pred_check
      %p65 = pneg %p64
    $region35: #{tpu_custom_call.1} parent=1 // pred_check_branch
      %67 = sbr.rel (%p65) target = $region37
    $region36: #{tpu_custom_call.1} parent=1 // pred_region
      %v68 = vld [vmem:[%s1] sm:$0xff]
      %v69 = vld [vmem:[%s1 + $0x8] sm:$0xff]
      %v70 = vld [vmem:[%s1 + $0x10] sm:$0xff]
      %v71 = vld [vmem:[%s1 + $0x18] sm:$0xff]
      %v72 = vld [vmem:[#allocation2] sm:$0xff]
      %v73 = vld [vmem:[#allocation2 + $0x8] sm:$0xff]
      %v74 = vld [vmem:[#allocation2 + $0x10] sm:$0xff]
      %v75 = vld [vmem:[#allocation2 + $0x18] sm:$0xff]
      %v76 = vld [vmem:[#allocation8] sm:$0xf]
      %v77 = vld [vmem:[#allocation8 + $0x4] sm:$0xf]
      %v78 = vld [vmem:[#allocation8 + $0x8] sm:$0xf]
      %v79 = vld [vmem:[#allocation8 + $0xc] sm:$0xf]
      %v80 = vld [vmem:[#allocation8 + $0x10] sm:$0xf]
      %v81 = vld [vmem:[#allocation8 + $0x14] sm:$0xf]
      %v82 = vld [vmem:[#allocation8 + $0x18] sm:$0xf]
      %v83 = vld [vmem:[#allocation8 + $0x1c] sm:$0xf]
      %v84 = vld [vmem:[#allocation6] sm:$0xff]
      %v85 = vld [vmem:[#allocation6 + $0x8] sm:$0xff]
      %v86 = vld [vmem:[#allocation6 + $0x10] sm:$0xff]
      %v87 = vld [vmem:[#allocation6 + $0x18] sm:$0xff]
      %v88 = vpack.c.bf16 %v73, %v72
      %v97 = vunpack.c.l.b16 %v76
      %v98 = vunpack.c.l.b16 %v77
      %v99 = vunpack.c.l.b16 %v78
      %v100 = vunpack.c.l.b16 %v79
      %v101 = vunpack.c.l.b16 %v80
      %v102 = vunpack.c.l.b16 %v81
      %v103 = vunpack.c.l.b16 %v82
      %v104 = vunpack.c.l.b16 %v83
      %v105 = vpack.c.b16 %v98, %v97
      %v106 = vpack.c.b16 %v100, %v99
      %v107 = vpack.c.b16 %v102, %v101
      %v108 = vpack.c.b16 %v104, %v103
      %vm113 = vcmask 523264
      %v115 = vsel %vm113, %v88, 0
      %117 = vmatprep.subr.bf16.mxu0 0
      %118 = vmatpush1.bf16.msra.mxu0 %v105
      %119 = vmatprep.subr.bf16.mxu0 0
      %120 = vmatpush1.bf16.msra.mxu0 %v106
      %121 = vmatprep.subr.bf16.mxu0 0
      %122 = vmatpush1.bf16.msra.mxu0 %v107
      %123 = vmatprep.subr.bf16.mxu0 0
      %124 = vmatpush1.bf16.msra.mxu0 %v108
      %125 = vmatprep.subr.bf16.mxu0 0
      %126 = vmatpush1.bf16.msra.mxu0 0
      %127 = vmatprep.subr.bf16.mxu0 0
      %128 = vmatpush1.bf16.msra.mxu0 0
      %129 = vmatprep.subr.bf16.mxu0 0
      %130 = vmatpush1.bf16.msra.mxu0 0
      %131 = vmatprep.subr.bf16.mxu0 0
      %132 = vmatpush1.bf16.msra.mxu0 0
      %133 = vmatprep.subr.bf16.mxu0 0
      %134 = vmatpush1.bf16.msra.mxu0 0
      %135 = vmatprep.subr.bf16.mxu0 0
      %136 = vmatpush1.bf16.msra.mxu0 0
      %137 = vmatprep.subr.bf16.mxu0 0
      %138 = vmatpush1.bf16.msra.mxu0 0
      %139 = vmatprep.subr.bf16.mxu0 0
      %140 = vmatpush1.bf16.msra.mxu0 0
      %141 = vmatprep.subr.bf16.mxu0 0
      %142 = vmatpush1.bf16.msra.mxu0 0
      %143 = vmatprep.subr.bf16.mxu0 0
      %144 = vmatpush1.bf16.msra.mxu0 0
      %145 = vmatprep.subr.bf16.mxu0 0
      %146 = vmatpush1.bf16.msra.mxu0 0
      %147 = vmatprep.subr.bf16.mxu0 0
      %148 = vmatpush1.bf16.msra.mxu0 0
      %149 = vmatprep.mubr.bf16.mxu0 0
      %150 = vmatmul.mubr.bf16.gmra.mrb[0].mxu0 %v115
      %v151 = vpop.f32.mrb[0].mxu0
      %v152 = vadd.f32 0.0, %v151
      %v153 = vpop.f32.mrb[0].mxu0
      %v154 = vpop.f32.mrb[0].mxu0
      %v155 = vadd.f32 0.0, %v154
      %v156 = vpop.f32.mrb[0].mxu0
      %157 = vdwg.mxu0
      %v158 = vadd.f32 %v84, %v152
      %v159 = vadd.f32 %v85, %v155
      %v160 = vpack.c.bf16 %v75, %v74
      %v162 = vsel %vm113, %v160, 0
      %164 = vmatprep.subr.bf16.mxu0 0
      %165 = vmatpush1.bf16.msra.mxu0 %v105
      %166 = vmatprep.subr.bf16.mxu0 0
      %167 = vmatpush1.bf16.msra.mxu0 %v106
      %168 = vmatprep.subr.bf16.mxu0 0
      %169 = vmatpush1.bf16.msra.mxu0 %v107
      %170 = vmatprep.subr.bf16.mxu0 0
      %171 = vmatpush1.bf16.msra.mxu0 %v108
      %172 = vmatprep.subr.bf16.mxu0 0
      %173 = vmatpush1.bf16.msra.mxu0 0
      %174 = vmatprep.subr.bf16.mxu0 0
      %175 = vmatpush1.bf16.msra.mxu0 0
      %176 = vmatprep.subr.bf16.mxu0 0
      %177 = vmatpush1.bf16.msra.mxu0 0
      %178 = vmatprep.subr.bf16.mxu0 0
      %179 = vmatpush1.bf16.msra.mxu0 0
      %180 = vmatprep.subr.bf16.mxu0 0
      %181 = vmatpush1.bf16.msra.mxu0 0
      %182 = vmatprep.subr.bf16.mxu0 0
      %183 = vmatpush1.bf16.msra.mxu0 0
      %184 = vmatprep.subr.bf16.mxu0 0
      %185 = vmatpush1.bf16.msra.mxu0 0
      %186 = vmatprep.subr.bf16.mxu0 0
      %187 = vmatpush1.bf16.msra.mxu0 0
      %188 = vmatprep.subr.bf16.mxu0 0
      %189 = vmatpush1.bf16.msra.mxu0 0
      %190 = vmatprep.subr.bf16.mxu0 0
      %191 = vmatpush1.bf16.msra.mxu0 0
      %192 = vmatprep.subr.bf16.mxu0 0
      %193 = vmatpush1.bf16.msra.mxu0 0
      %194 = vmatprep.subr.bf16.mxu0 0
      %195 = vmatpush1.bf16.msra.mxu0 0
      %196 = vmatprep.mubr.bf16.mxu0 0
      %197 = vmatmul.mubr.bf16.gmra.mrb[0].mxu0 %v162
      %v198 = vpop.f32.mrb[0].mxu0
      %v199 = vadd.f32 0.0, %v198
      %v200 = vpop.f32.mrb[0].mxu0
      %v201 = vpop.f32.mrb[0].mxu0
      %v202 = vadd.f32 0.0, %v201
      %v203 = vpop.f32.mrb[0].mxu0
      %204 = vdwg.mxu0
      %v205 = vadd.f32 %v86, %v199
      %v206 = vadd.f32 %v87, %v202
      %v207 = vtanh.pop %v158
      %v208 = vtanh.pop %v159
      %v209 = vtanh.pop %v205
      %v210 = vtanh.pop %v206
      %v211 = vstv %s53
      %vm212 = vcmp.lt.s32.totalorder %v211, %v68
      %vm213 = vcmp.lt.s32.totalorder %v211, %v69
      %v214 = vsel %vm212, 1, 0
      %v215 = vsel %vm213, 1, 0
      %216 = vset.pattern.permute.xlu0 0
      %217 = vperm.xlu0 %216, %v214
      %v218 = vpop.permute.xlu0 %217
      %219 = vset.pattern.permute.xlu0 0
      %220 = vperm.xlu0 %219, %v215
      %v221 = vpop.permute.xlu0 %220
      %vm222 = vcmp.eq.s32.totalorder %v218, 1
      %vm223 = vcmp.eq.s32.totalorder %v221, 1
      %v224 = vsel %vm222, %v207, %v72
      %v225 = vsel %vm223, %v208, %v73
      %vm226 = vcmp.lt.s32.totalorder %v211, %v70
      %vm227 = vcmp.lt.s32.totalorder %v211, %v71
      %v228 = vsel %vm226, 1, 0
      %v229 = vsel %vm227, 1, 0
      %230 = vset.pattern.permute.xlu0 0
      %231 = vperm.xlu0 %230, %v228
      %v232 = vpop.permute.xlu0 %231
      %233 = vset.pattern.permute.xlu0 0
      %234 = vperm.xlu0 %233, %v229
      %v235 = vpop.permute.xlu0 %234
      %vm236 = vcmp.eq.s32.totalorder %v232, 1
      %vm237 = vcmp.eq.s32.totalorder %v235, 1
      %v238 = vsel %vm236, %v209, %v74
      %v239 = vsel %vm237, %v210, %v75
      %s240 = sadd.s32 %s53, 1
      %s241 = scalar_lea.vmem [#allocation8], 32
      %v242 = vld [vmem:[%s241] sm:$0xf]
      %v243 = vld [vmem:[%s241 + $0x4] sm:$0xf]
      %v244 = vld [vmem:[%s241 + $0x8] sm:$0xf]
      %v245 = vld [vmem:[%s241 + $0xc] sm:$0xf]
      %v246 = vld [vmem:[%s241 + $0x10] sm:$0xf]
      %v247 = vld [vmem:[%s241 + $0x14] sm:$0xf]
      %v248 = vld [vmem:[%s241 + $0x18] sm:$0xf]
      %v249 = vld [vmem:[%s241 + $0x1c] sm:$0xf]
      %s250 = scalar_lea.vmem [#allocation6], 32
      %v251 = vld [vmem:[%s250] sm:$0xff]
      %v252 = vld [vmem:[%s250 + $0x8] sm:$0xff]
      %v253 = vld [vmem:[%s250 + $0x10] sm:$0xff]
      %v254 = vld [vmem:[%s250 + $0x18] sm:$0xff]
      %v255 = vpack.c.bf16 %v225, %v224
      %v264 = vunpack.c.l.b16 %v242
      %v265 = vunpack.c.l.b16 %v243
      %v266 = vunpack.c.l.b16 %v244
      %v267 = vunpack.c.l.b16 %v245
      %v268 = vunpack.c.l.b16 %v246
      %v269 = vunpack.c.l.b16 %v247
      %v270 = vunpack.c.l.b16 %v248
      %v271 = vunpack.c.l.b16 %v249
      %v272 = vpack.c.b16 %v265, %v264
      %v273 = vpack.c.b16 %v267, %v266
      %v274 = vpack.c.b16 %v269, %v268
      %v275 = vpack.c.b16 %v271, %v270
      %v281 = vsel %vm113, %v255, 0
      %283 = vmatprep.subr.bf16.mxu0 0
      %284 = vmatpush1.bf16.msra.mxu0 %v272
      %285 = vmatprep.subr.bf16.mxu0 0
      %286 = vmatpush1.bf16.msra.mxu0 %v273
      %287 = vmatprep.subr.bf16.mxu0 0
      %288 = vmatpush1.bf16.msra.mxu0 %v274
      %289 = vmatprep.subr.bf16.mxu0 0
      %290 = vmatpush1.bf16.msra.mxu0 %v275
      %291 = vmatprep.subr.bf16.mxu0 0
      %292 = vmatpush1.bf16.msra.mxu0 0
      %293 = vmatprep.subr.bf16.mxu0 0
      %294 = vmatpush1.bf16.msra.mxu0 0
      %295 = vmatprep.subr.bf16.mxu0 0
      %296 = vmatpush1.bf16.msra.mxu0 0
      %297 = vmatprep.subr.bf16.mxu0 0
      %298 = vmatpush1.bf16.msra.mxu0 0
      %299 = vmatprep.subr.bf16.mxu0 0
      %300 = vmatpush1.bf16.msra.mxu0 0
      %301 = vmatprep.subr.bf16.mxu0 0
      %302 = vmatpush1.bf16.msra.mxu0 0
      %303 = vmatprep.subr.bf16.mxu0 0
      %304 = vmatpush1.bf16.msra.mxu0 0
      %305 = vmatprep.subr.bf16.mxu0 0
      %306 = vmatpush1.bf16.msra.mxu0 0
      %307 = vmatprep.subr.bf16.mxu0 0
      %308 = vmatpush1.bf16.msra.mxu0 0
      %309 = vmatprep.subr.bf16.mxu0 0
      %310 = vmatpush1.bf16.msra.mxu0 0
      %311 = vmatprep.subr.bf16.mxu0 0
      %312 = vmatpush1.bf16.msra.mxu0 0
      %313 = vmatprep.subr.bf16.mxu0 0
      %314 = vmatpush1.bf16.msra.mxu0 0
      %315 = vmatprep.mubr.bf16.mxu0 0
      %316 = vmatmul.mubr.bf16.gmra.mrb[0].mxu0 %v281
      %v317 = vpop.f32.mrb[0].mxu0
      %v318 = vadd.f32 0.0, %v317
      %v319 = vpop.f32.mrb[0].mxu0
      %v320 = vpop.f32.mrb[0].mxu0
      %v321 = vadd.f32 0.0, %v320
      %v322 = vpop.f32.mrb[0].mxu0
      %323 = vdwg.mxu0
      %v324 = vadd.f32 %v251, %v318
      %v325 = vadd.f32 %v252, %v321
      %v326 = vpack.c.bf16 %v239, %v238
      %v328 = vsel %vm113, %v326, 0
      %330 = vmatprep.subr.bf16.mxu0 0
      %331 = vmatpush1.bf16.msra.mxu0 %v272
      %332 = vmatprep.subr.bf16.mxu0 0
      %333 = vmatpush1.bf16.msra.mxu0 %v273
      %334 = vmatprep.subr.bf16.mxu0 0
      %335 = vmatpush1.bf16.msra.mxu0 %v274
      %336 = vmatprep.subr.bf16.mxu0 0
      %337 = vmatpush1.bf16.msra.mxu0 %v275
      %338 = vmatprep.subr.bf16.mxu0 0
      %339 = vmatpush1.bf16.msra.mxu0 0
      %340 = vmatprep.subr.bf16.mxu0 0
      %341 = vmatpush1.bf16.msra.mxu0 0
      %342 = vmatprep.subr.bf16.mxu0 0
      %343 = vmatpush1.bf16.msra.mxu0 0
      %344 = vmatprep.subr.bf16.mxu0 0
      %345 = vmatpush1.bf16.msra.mxu0 0
      %346 = vmatprep.subr.bf16.mxu0 0
      %347 = vmatpush1.bf16.msra.mxu0 0
      %348 = vmatprep.subr.bf16.mxu0 0
      %349 = vmatpush1.bf16.msra.mxu0 0
      %350 = vmatprep.subr.bf16.mxu0 0
      %351 = vmatpush1.bf16.msra.mxu0 0
      %352 = vmatprep.subr.bf16.mxu0 0
      %353 = vmatpush1.bf16.msra.mxu0 0
      %354 = vmatprep.subr.bf16.mxu0 0
      %355 = vmatpush1.bf16.msra.mxu0 0
      %356 = vmatprep.subr.bf16.mxu0 0
      %357 = vmatpush1.bf16.msra.mxu0 0
      %358 = vmatprep.subr.bf16.mxu0 0
      %359 = vmatpush1.bf16.msra.mxu0 0
      %360 = vmatprep.subr.bf16.mxu0 0
      %361 = vmatpush1.bf16.msra.mxu0 0
      %362 = vmatprep.mubr.bf16.mxu0 0
      %363 = vmatmul.mubr.bf16.gmra.mrb[0].mxu0 %v328
      %v364 = vpop.f32.mrb[0].mxu0
      %v365 = vadd.f32 0.0, %v364
      %v366 = vpop.f32.mrb[0].mxu0
      %v367 = vpop.f32.mrb[0].mxu0
      %v368 = vadd.f32 0.0, %v367
      %v369 = vpop.f32.mrb[0].mxu0
      %370 = vdwg.mxu0
      %v371 = vadd.f32 %v253, %v365
      %v372 = vadd.f32 %v254, %v368
      %v373 = vtanh.pop %v324
      %v374 = vtanh.pop %v325
      %v375 = vtanh.pop %v371
      %v376 = vtanh.pop %v372
      %v377 = vstv %s240
      %vm378 = vcmp.lt.s32.totalorder %v377, %v68
      %vm379 = vcmp.lt.s32.totalorder %v377, %v69
      %v380 = vsel %vm378, 1, 0
      %v381 = vsel %vm379, 1, 0
      %382 = vset.pattern.permute.xlu0 0
      %383 = vperm.xlu0 %382, %v380
      %v384 = vpop.permute.xlu0 %383
      %385 = vset.pattern.permute.xlu0 0
      %386 = vperm.xlu0 %385, %v381
      %v387 = vpop.permute.xlu0 %386
      %vm388 = vcmp.eq.s32.totalorder %v384, 1
      %vm389 = vcmp.eq.s32.totalorder %v387, 1
      %v390 = vsel %vm388, %v373, %v224
      %v391 = vsel %vm389, %v374, %v225
      %vm392 = vcmp.lt.s32.totalorder %v377, %v70
      %vm393 = vcmp.lt.s32.totalorder %v377, %v71
      %v394 = vsel %vm392, 1, 0
      %v395 = vsel %vm393, 1, 0
      %396 = vset.pattern.permute.xlu0 0
      %397 = vperm.xlu0 %396, %v394
      %v398 = vpop.permute.xlu0 %397
      %399 = vset.pattern.permute.xlu0 0
      %400 = vperm.xlu0 %399, %v395
      %v401 = vpop.permute.xlu0 %400
      %vm402 = vcmp.eq.s32.totalorder %v398, 1
      %vm403 = vcmp.eq.s32.totalorder %v401, 1
      %v404 = vsel %vm402, %v375, %v238
      %v405 = vsel %vm403, %v376, %v239
      %s406 = sadd.s32 %s53, 2
      %s407 = scalar_lea.vmem [#allocation8], 64
      %v408 = vld [vmem:[%s407] sm:$0xf]
      %v409 = vld [vmem:[%s407 + $0x4] sm:$0xf]
      %v410 = vld [vmem:[%s407 + $0x8] sm:$0xf]
      %v411 = vld [vmem:[%s407 + $0xc] sm:$0xf]
      %v412 = vld [vmem:[%s407 + $0x10] sm:$0xf]
      %v413 = vld [vmem:[%s407 + $0x14] sm:$0xf]
      %v414 = vld [vmem:[%s407 + $0x18] sm:$0xf]
      %v415 = vld [vmem:[%s407 + $0x1c] sm:$0xf]
      %s416 = scalar_lea.vmem [#allocation6], 64
      %v417 = vld [vmem:[%s416] sm:$0xff]
      %v418 = vld [vmem:[%s416 + $0x8] sm:$0xff]
      %v419 = vld [vmem:[%s416 + $0x10] sm:$0xff]
      %v420 = vld [vmem:[%s416 + $0x18] sm:$0xff]
      %v421 = vpack.c.bf16 %v391, %v390
      %v430 = vunpack.c.l.b16 %v408
      %v431 = vunpack.c.l.b16 %v409
      %v432 = vunpack.c.l.b16 %v410
      %v433 = vunpack.c.l.b16 %v411
      %v434 = vunpack.c.l.b16 %v412
      %v435 = vunpack.c.l.b16 %v413
      %v436 = vunpack.c.l.b16 %v414
      %v437 = vunpack.c.l.b16 %v415
      %v438 = vpack.c.b16 %v431, %v430
      %v439 = vpack.c.b16 %v433, %v432
      %v440 = vpack.c.b16 %v435, %v434
      %v441 = vpack.c.b16 %v437, %v436
      %v447 = vsel %vm113, %v421, 0
      %449 = vmatprep.subr.bf16.mxu0 0
      %450 = vmatpush1.bf16.msra.mxu0 %v438
      %451 = vmatprep.subr.bf16.mxu0 0
      %452 = vmatpush1.bf16.msra.mxu0 %v439
      %453 = vmatprep.subr.bf16.mxu0 0
      %454 = vmatpush1.bf16.msra.mxu0 %v440
      %455 = vmatprep.subr.bf16.mxu0 0
      %456 = vmatpush1.bf16.msra.mxu0 %v441
      %457 = vmatprep.subr.bf16.mxu0 0
      %458 = vmatpush1.bf16.msra.mxu0 0
      %459 = vmatprep.subr.bf16.mxu0 0
      %460 = vmatpush1.bf16.msra.mxu0 0
      %461 = vmatprep.subr.bf16.mxu0 0
      %462 = vmatpush1.bf16.msra.mxu0 0
      %463 = vmatprep.subr.bf16.mxu0 0
      %464 = vmatpush1.bf16.msra.mxu0 0
      %465 = vmatprep.subr.bf16.mxu0 0
      %466 = vmatpush1.bf16.msra.mxu0 0
      %467 = vmatprep.subr.bf16.mxu0 0
      %468 = vmatpush1.bf16.msra.mxu0 0
      %469 = vmatprep.subr.bf16.mxu0 0
      %470 = vmatpush1.bf16.msra.mxu0 0
      %471 = vmatprep.subr.bf16.mxu0 0
      %472 = vmatpush1.bf16.msra.mxu0 0
      %473 = vmatprep.subr.bf16.mxu0 0
      %474 = vmatpush1.bf16.msra.mxu0 0
      %475 = vmatprep.subr.bf16.mxu0 0
      %476 = vmatpush1.bf16.msra.mxu0 0
      %477 = vmatprep.subr.bf16.mxu0 0
      %478 = vmatpush1.bf16.msra.mxu0 0
      %479 = vmatprep.subr.bf16.mxu0 0
      %480 = vmatpush1.bf16.msra.mxu0 0
      %481 = vmatprep.mubr.bf16.mxu0 0
      %482 = vmatmul.mubr.bf16.gmra.mrb[0].mxu0 %v447
      %v483 = vpop.f32.mrb[0].mxu0
      %v484 = vadd.f32 0.0, %v483
      %v485 = vpop.f32.mrb[0].mxu0
      %v486 = vpop.f32.mrb[0].mxu0
      %v487 = vadd.f32 0.0, %v486
      %v488 = vpop.f32.mrb[0].mxu0
      %489 = vdwg.mxu0
      %v490 = vadd.f32 %v417, %v484
      %v491 = vadd.f32 %v418, %v487
      %v492 = vpack.c.bf16 %v405, %v404
      %v494 = vsel %vm113, %v492, 0
      %496 = vmatprep.subr.bf16.mxu0 0
      %497 = vmatpush1.bf16.msra.mxu0 %v438
      %498 = vmatprep.subr.bf16.mxu0 0
      %499 = vmatpush1.bf16.msra.mxu0 %v439
      %500 = vmatprep.subr.bf16.mxu0 0
      %501 = vmatpush1.bf16.msra.mxu0 %v440
      %502 = vmatprep.subr.bf16.mxu0 0
      %503 = vmatpush1.bf16.msra.mxu0 %v441
      %504 = vmatprep.subr.bf16.mxu0 0
      %505 = vmatpush1.bf16.msra.mxu0 0
      %506 = vmatprep.subr.bf16.mxu0 0
      %507 = vmatpush1.bf16.msra.mxu0 0
      %508 = vmatprep.subr.bf16.mxu0 0
      %509 = vmatpush1.bf16.msra.mxu0 0
      %510 = vmatprep.subr.bf16.mxu0 0
      %511 = vmatpush1.bf16.msra.mxu0 0
      %512 = vmatprep.subr.bf16.mxu0 0
      %513 = vmatpush1.bf16.msra.mxu0 0
      %514 = vmatprep.subr.bf16.mxu0 0
      %515 = vmatpush1.bf16.msra.mxu0 0
      %516 = vmatprep.subr.bf16.mxu0 0
      %517 = vmatpush1.bf16.msra.mxu0 0
      %518 = vmatprep.subr.bf16.mxu0 0
      %519 = vmatpush1.bf16.msra.mxu0 0
      %520 = vmatprep.subr.bf16.mxu0 0
      %521 = vmatpush1.bf16.msra.mxu0 0
      %522 = vmatprep.subr.bf16.mxu0 0
      %523 = vmatpush1.bf16.msra.mxu0 0
      %524 = vmatprep.subr.bf16.mxu0 0
      %525 = vmatpush1.bf16.msra.mxu0 0
      %526 = vmatprep.subr.bf16.mxu0 0
      %527 = vmatpush1.bf16.msra.mxu0 0
      %528 = vmatprep.mubr.bf16.mxu0 0
      %529 = vmatmul.mubr.bf16.gmra.mrb[0].mxu0 %v494
      %v530 = vpop.f32.mrb[0].mxu0
      %v531 = vadd.f32 0.0, %v530
      %v532 = vpop.f32.mrb[0].mxu0
      %v533 = vpop.f32.mrb[0].mxu0
      %v534 = vadd.f32 0.0, %v533
      %v535 = vpop.f32.mrb[0].mxu0
      %536 = vdwg.mxu0
      %v537 = vadd.f32 %v419, %v531
      %v538 = vadd.f32 %v420, %v534
      %v539 = vtanh.pop %v490
      %v540 = vtanh.pop %v491
      %v541 = vtanh.pop %v537
      %v542 = vtanh.pop %v538
      %v543 = vstv %s406
      %vm544 = vcmp.lt.s32.totalorder %v543, %v68
      %vm545 = vcmp.lt.s32.totalorder %v543, %v69
      %v546 = vsel %vm544, 1, 0
      %v547 = vsel %vm545, 1, 0
      %548 = vset.pattern.permute.xlu0 0
      %549 = vperm.xlu0 %548, %v546
      %v550 = vpop.permute.xlu0 %549
      %551 = vset.pattern.permute.xlu0 0
      %552 = vperm.xlu0 %551, %v547
      %v553 = vpop.permute.xlu0 %552
      %vm554 = vcmp.eq.s32.totalorder %v550, 1
      %vm555 = vcmp.eq.s32.totalorder %v553, 1
      %v556 = vsel %vm554, %v539, %v390
      %v557 = vsel %vm555, %v540, %v391
      %vm558 = vcmp.lt.s32.totalorder %v543, %v70
      %vm559 = vcmp.lt.s32.totalorder %v543, %v71
      %v560 = vsel %vm558, 1, 0
      %v561 = vsel %vm559, 1, 0
      %562 = vset.pattern.permute.xlu0 0
      %563 = vperm.xlu0 %562, %v560
      %v564 = vpop.permute.xlu0 %563
      %565 = vset.pattern.permute.xlu0 0
      %566 = vperm.xlu0 %565, %v561
      %v567 = vpop.permute.xlu0 %566
      %vm568 = vcmp.eq.s32.totalorder %v564, 1
      %vm569 = vcmp.eq.s32.totalorder %v567, 1
      %v570 = vsel %vm568, %v541, %v404
      %v571 = vsel %vm569, %v542, %v405
      %s572 = sadd.s32 %s53, 3
      %s573 = scalar_lea.vmem [#allocation8], 96
      %v574 = vld [vmem:[%s573] sm:$0xf]
      %v575 = vld [vmem:[%s573 + $0x4] sm:$0xf]
      %v576 = vld [vmem:[%s573 + $0x8] sm:$0xf]
      %v577 = vld [vmem:[%s573 + $0xc] sm:$0xf]
      %v578 = vld [vmem:[%s573 + $0x10] sm:$0xf]
      %v579 = vld [vmem:[%s573 + $0x14] sm:$0xf]
      %v580 = vld [vmem:[%s573 + $0x18] sm:$0xf]
      %v581 = vld [vmem:[%s573 + $0x1c] sm:$0xf]
      %s582 = scalar_lea.vmem [#allocation6], 96
      %v583 = vld [vmem:[%s582] sm:$0xff]
      %v584 = vld [vmem:[%s582 + $0x8] sm:$0xff]
      %v585 = vld [vmem:[%s582 + $0x10] sm:$0xff]
      %v586 = vld [vmem:[%s582 + $0x18] sm:$0xff]
      %v587 = vpack.c.bf16 %v557, %v556
      %v596 = vunpack.c.l.b16 %v574
      %v597 = vunpack.c.l.b16 %v575
      %v598 = vunpack.c.l.b16 %v576
      %v599 = vunpack.c.l.b16 %v577
      %v600 = vunpack.c.l.b16 %v578
      %v601 = vunpack.c.l.b16 %v579
      %v602 = vunpack.c.l.b16 %v580
      %v603 = vunpack.c.l.b16 %v581
      %v604 = vpack.c.b16 %v597, %v596
      %v605 = vpack.c.b16 %v599, %v598
      %v606 = vpack.c.b16 %v601, %v600
      %v607 = vpack.c.b16 %v603, %v602
      %v613 = vsel %vm113, %v587, 0
      %615 = vmatprep.subr.bf16.mxu0 0
      %616 = vmatpush1.bf16.msra.mxu0 %v604
      %617 = vmatprep.subr.bf16.mxu0 0
      %618 = vmatpush1.bf16.msra.mxu0 %v605
      %619 = vmatprep.subr.bf16.mxu0 0
      %620 = vmatpush1.bf16.msra.mxu0 %v606
      %621 = vmatprep.subr.bf16.mxu0 0
      %622 = vmatpush1.bf16.msra.mxu0 %v607
      %623 = vmatprep.subr.bf16.mxu0 0
      %624 = vmatpush1.bf16.msra.mxu0 0
      %625 = vmatprep.subr.bf16.mxu0 0
      %626 = vmatpush1.bf16.msra.mxu0 0
      %627 = vmatprep.subr.bf16.mxu0 0
      %628 = vmatpush1.bf16.msra.mxu0 0
      %629 = vmatprep.subr.bf16.mxu0 0
      %630 = vmatpush1.bf16.msra.mxu0 0
      %631 = vmatprep.subr.bf16.mxu0 0
      %632 = vmatpush1.bf16.msra.mxu0 0
      %633 = vmatprep.subr.bf16.mxu0 0
      %634 = vmatpush1.bf16.msra.mxu0 0
      %635 = vmatprep.subr.bf16.mxu0 0
      %636 = vmatpush1.bf16.msra.mxu0 0
      %637 = vmatprep.subr.bf16.mxu0 0
      %638 = vmatpush1.bf16.msra.mxu0 0
      %639 = vmatprep.subr.bf16.mxu0 0
      %640 = vmatpush1.bf16.msra.mxu0 0
      %641 = vmatprep.subr.bf16.mxu0 0
      %642 = vmatpush1.bf16.msra.mxu0 0
      %643 = vmatprep.subr.bf16.mxu0 0
      %644 = vmatpush1.bf16.msra.mxu0 0
      %645 = vmatprep.subr.bf16.mxu0 0
      %646 = vmatpush1.bf16.msra.mxu0 0
      %647 = vmatprep.mubr.bf16.mxu0 0
      %648 = vmatmul.mubr.bf16.gmra.mrb[0].mxu0 %v613
      %v649 = vpop.f32.mrb[0].mxu0
      %v650 = vadd.f32 0.0, %v649
      %v651 = vpop.f32.mrb[0].mxu0
      %v652 = vpop.f32.mrb[0].mxu0
      %v653 = vadd.f32 0.0, %v652
      %v654 = vpop.f32.mrb[0].mxu0
      %655 = vdwg.mxu0
      %v656 = vadd.f32 %v583, %v650
      %v657 = vadd.f32 %v584, %v653
      %v658 = vpack.c.bf16 %v571, %v570
      %v660 = vsel %vm113, %v658, 0
      %662 = vmatprep.subr.bf16.mxu0 0
      %663 = vmatpush1.bf16.msra.mxu0 %v604
      %664 = vmatprep.subr.bf16.mxu0 0
      %665 = vmatpush1.bf16.msra.mxu0 %v605
      %666 = vmatprep.subr.bf16.mxu0 0
      %667 = vmatpush1.bf16.msra.mxu0 %v606
      %668 = vmatprep.subr.bf16.mxu0 0
      %669 = vmatpush1.bf16.msra.mxu0 %v607
      %670 = vmatprep.subr.bf16.mxu0 0
      %671 = vmatpush1.bf16.msra.mxu0 0
      %672 = vmatprep.subr.bf16.mxu0 0
      %673 = vmatpush1.bf16.msra.mxu0 0
      %674 = vmatprep.subr.bf16.mxu0 0
      %675 = vmatpush1.bf16.msra.mxu0 0
      %676 = vmatprep.subr.bf16.mxu0 0
      %677 = vmatpush1.bf16.msra.mxu0 0
      %678 = vmatprep.subr.bf16.mxu0 0
      %679 = vmatpush1.bf16.msra.mxu0 0
      %680 = vmatprep.subr.bf16.mxu0 0
      %681 = vmatpush1.bf16.msra.mxu0 0
      %682 = vmatprep.subr.bf16.mxu0 0
      %683 = vmatpush1.bf16.msra.mxu0 0
      %684 = vmatprep.subr.bf16.mxu0 0
      %685 = vmatpush1.bf16.msra.mxu0 0
      %686 = vmatprep.subr.bf16.mxu0 0
      %687 = vmatpush1.bf16.msra.mxu0 0
      %688 = vmatprep.subr.bf16.mxu0 0
      %689 = vmatpush1.bf16.msra.mxu0 0
      %690 = vmatprep.subr.bf16.mxu0 0
      %691 = vmatpush1.bf16.msra.mxu0 0
      %692 = vmatprep.subr.bf16.mxu0 0
      %693 = vmatpush1.bf16.msra.mxu0 0
      %694 = vmatprep.mubr.bf16.mxu0 0
      %695 = vmatmul.mubr.bf16.gmra.mrb[0].mxu0 %v660
      %v696 = vpop.f32.mrb[0].mxu0
      %v697 = vadd.f32 0.0, %v696
      %v698 = vpop.f32.mrb[0].mxu0
      %v699 = vpop.f32.mrb[0].mxu0
      %v700 = vadd.f32 0.0, %v699
      %v701 = vpop.f32.mrb[0].mxu0
      %702 = vdwg.mxu0
      %v703 = vadd.f32 %v585, %v697
      %v704 = vadd.f32 %v586, %v700
      %v705 = vtanh.pop %v656
      %v706 = vtanh.pop %v657
      %v707 = vtanh.pop %v703
      %v708 = vtanh.pop %v704
      %v709 = vstv %s572
      %vm710 = vcmp.lt.s32.totalorder %v709, %v68
      %vm711 = vcmp.lt.s32.totalorder %v709, %v69
      %v712 = vsel %vm710, 1, 0
      %v713 = vsel %vm711, 1, 0
      %714 = vset.pattern.permute.xlu0 0
      %715 = vperm.xlu0 %714, %v712
      %v716 = vpop.permute.xlu0 %715
      %717 = vset.pattern.permute.xlu0 0
      %718 = vperm.xlu0 %717, %v713
      %v719 = vpop.permute.xlu0 %718
      %vm720 = vcmp.eq.s32.totalorder %v716, 1
      %vm721 = vcmp.eq.s32.totalorder %v719, 1
      %v722 = vsel %vm720, %v705, %v556
      %v723 = vsel %vm721, %v706, %v557
      %vm724 = vcmp.lt.s32.totalorder %v709, %v70
      %vm725 = vcmp.lt.s32.totalorder %v709, %v71
      %v726 = vsel %vm724, 1, 0
      %v727 = vsel %vm725, 1, 0
      %728 = vset.pattern.permute.xlu0 0
      %729 = vperm.xlu0 %728, %v726
      %v730 = vpop.permute.xlu0 %729
      %731 = vset.pattern.permute.xlu0 0
      %732 = vperm.xlu0 %731, %v727
      %v733 = vpop.permute.xlu0 %732
      %vm734 = vcmp.eq.s32.totalorder %v730, 1
      %vm735 = vcmp.eq.s32.totalorder %v733, 1
      %v736 = vsel %vm734, %v707, %v570
      %v737 = vsel %vm735, %v708, %v571
      %s738 = sadd.s32 %s53, 4
      %s739 = scalar_lea.vmem [#allocation8], 128
      %v740 = vld [vmem:[%s739] sm:$0xf]
      %v741 = vld [vmem:[%s739 + $0x4] sm:$0xf]
      %v742 = vld [vmem:[%s739 + $0x8] sm:$0xf]
      %v743 = vld [vmem:[%s739 + $0xc] sm:$0xf]
      %v744 = vld [vmem:[%s739 + $0x10] sm:$0xf]
      %v745 = vld [vmem:[%s739 + $0x14] sm:$0xf]
      %v746 = vld [vmem:[%s739 + $0x18] sm:$0xf]
      %v747 = vld [vmem:[%s739 + $0x1c] sm:$0xf]
      %s748 = scalar_lea.vmem [#allocation6], 128
      %v749 = vld [vmem:[%s748] sm:$0xff]
      %v750 = vld [vmem:[%s748 + $0x8] sm:$0xff]
      %v751 = vld [vmem:[%s748 + $0x10] sm:$0xff]
      %v752 = vld [vmem:[%s748 + $0x18] sm:$0xff]
      %v753 = vpack.c.bf16 %v723, %v722
      %v762 = vunpack.c.l.b16 %v740
      %v763 = vunpack.c.l.b16 %v741
      %v764 = vunpack.c.l.b16 %v742
      %v765 = vunpack.c.l.b16 %v743
      %v766 = vunpack.c.l.b16 %v744
      %v767 = vunpack.c.l.b16 %v745
      %v768 = vunpack.c.l.b16 %v746
      %v769 = vunpack.c.l.b16 %v747
      %v770 = vpack.c.b16 %v763, %v762
      %v771 = vpack.c.b16 %v765, %v764
      %v772 = vpack.c.b16 %v767, %v766
      %v773 = vpack.c.b16 %v769, %v768
      %v779 = vsel %vm113, %v753, 0
      %781 = vmatprep.subr.bf16.mxu0 0
      %782 = vmatpush1.bf16.msra.mxu0 %v770
      %783 = vmatprep.subr.bf16.mxu0 0
      %784 = vmatpush1.bf16.msra.mxu0 %v771
      %785 = vmatprep.subr.bf16.mxu0 0
      %786 = vmatpush1.bf16.msra.mxu0 %v772
      %787 = vmatprep.subr.bf16.mxu0 0
      %788 = vmatpush1.bf16.msra.mxu0 %v773
      %789 = vmatprep.subr.bf16.mxu0 0
      %790 = vmatpush1.bf16.msra.mxu0 0
      %791 = vmatprep.subr.bf16.mxu0 0
      %792 = vmatpush1.bf16.msra.mxu0 0
      %793 = vmatprep.subr.bf16.mxu0 0
      %794 = vmatpush1.bf16.msra.mxu0 0
      %795 = vmatprep.subr.bf16.mxu0 0
      %796 = vmatpush1.bf16.msra.mxu0 0
      %797 = vmatprep.subr.bf16.mxu0 0
      %798 = vmatpush1.bf16.msra.mxu0 0
      %799 = vmatprep.subr.bf16.mxu0 0
      %800 = vmatpush1.bf16.msra.mxu0 0
      %801 = vmatprep.subr.bf16.mxu0 0
      %802 = vmatpush1.bf16.msra.mxu0 0
      %803 = vmatprep.subr.bf16.mxu0 0
      %804 = vmatpush1.bf16.msra.mxu0 0
      %805 = vmatprep.subr.bf16.mxu0 0
      %806 = vmatpush1.bf16.msra.mxu0 0
      %807 = vmatprep.subr.bf16.mxu0 0
      %808 = vmatpush1.bf16.msra.mxu0 0
      %809 = vmatprep.subr.bf16.mxu0 0
      %810 = vmatpush1.bf16.msra.mxu0 0
      %811 = vmatprep.subr.bf16.mxu0 0
      %812 = vmatpush1.bf16.msra.mxu0 0
      %813 = vmatprep.mubr.bf16.mxu0 0
      %814 = vmatmul.mubr.bf16.gmra.mrb[0].mxu0 %v779
      %v815 = vpop.f32.mrb[0].mxu0
      %v816 = vadd.f32 0.0, %v815
      %v817 = vpop.f32.mrb[0].mxu0
      %v818 = vpop.f32.mrb[0].mxu0
      %v819 = vadd.f32 0.0, %v818
      %v820 = vpop.f32.mrb[0].mxu0
      %821 = vdwg.mxu0
      %v822 = vadd.f32 %v749, %v816
      %v823 = vadd.f32 %v750, %v819
      %v824 = vpack.c.bf16 %v737, %v736
      %v826 = vsel %vm113, %v824, 0
      %828 = vmatprep.subr.bf16.mxu0 0
      %829 = vmatpush1.bf16.msra.mxu0 %v770
      %830 = vmatprep.subr.bf16.mxu0 0
      %831 = vmatpush1.bf16.msra.mxu0 %v771
      %832 = vmatprep.subr.bf16.mxu0 0
      %833 = vmatpush1.bf16.msra.mxu0 %v772
      %834 = vmatprep.subr.bf16.mxu0 0
      %835 = vmatpush1.bf16.msra.mxu0 %v773
      %836 = vmatprep.subr.bf16.mxu0 0
      %837 = vmatpush1.bf16.msra.mxu0 0
      %838 = vmatprep.subr.bf16.mxu0 0
      %839 = vmatpush1.bf16.msra.mxu0 0
      %840 = vmatprep.subr.bf16.mxu0 0
      %841 = vmatpush1.bf16.msra.mxu0 0
      %842 = vmatprep.subr.bf16.mxu0 0
      %843 = vmatpush1.bf16.msra.mxu0 0
      %844 = vmatprep.subr.bf16.mxu0 0
      %845 = vmatpush1.bf16.msra.mxu0 0
      %846 = vmatprep.subr.bf16.mxu0 0
      %847 = vmatpush1.bf16.msra.mxu0 0
      %848 = vmatprep.subr.bf16.mxu0 0
      %849 = vmatpush1.bf16.msra.mxu0 0
      %850 = vmatprep.subr.bf16.mxu0 0
      %851 = vmatpush1.bf16.msra.mxu0 0
      %852 = vmatprep.subr.bf16.mxu0 0
      %853 = vmatpush1.bf16.msra.mxu0 0
      %854 = vmatprep.subr.bf16.mxu0 0
      %855 = vmatpush1.bf16.msra.mxu0 0
      %856 = vmatprep.subr.bf16.mxu0 0
      %857 = vmatpush1.bf16.msra.mxu0 0
      %858 = vmatprep.subr.bf16.mxu0 0
      %859 = vmatpush1.bf16.msra.mxu0 0
      %860 = vmatprep.mubr.bf16.mxu0 0
      %861 = vmatmul.mubr.bf16.gmra.mrb[0].mxu0 %v826
      %v862 = vpop.f32.mrb[0].mxu0
      %v863 = vadd.f32 0.0, %v862
      %v864 = vpop.f32.mrb[0].mxu0
      %v865 = vpop.f32.mrb[0].mxu0
      %v866 = vadd.f32 0.0, %v865
      %v867 = vpop.f32.mrb[0].mxu0
      %868 = vdwg.mxu0
      %v869 = vadd.f32 %v751, %v863
      %v870 = vadd.f32 %v752, %v866
      %v871 = vtanh.pop %v822
      %v872 = vtanh.pop %v823
      %v873 = vtanh.pop %v869
      %v874 = vtanh.pop %v870
      %v875 = vstv %s738
      %vm876 = vcmp.lt.s32.totalorder %v875, %v68
      %vm877 = vcmp.lt.s32.totalorder %v875, %v69
      %v878 = vsel %vm876, 1, 0
      %v879 = vsel %vm877, 1, 0
      %880 = vset.pattern.permute.xlu0 0
      %881 = vperm.xlu0 %880, %v878
      %v882 = vpop.permute.xlu0 %881
      %883 = vset.pattern.permute.xlu0 0
      %884 = vperm.xlu0 %883, %v879
      %v885 = vpop.permute.xlu0 %884
      %vm886 = vcmp.eq.s32.totalorder %v882, 1
      %vm887 = vcmp.eq.s32.totalorder %v885, 1
      %v888 = vsel %vm886, %v871, %v722
      %v889 = vsel %vm887, %v872, %v723
      %vm890 = vcmp.lt.s32.totalorder %v875, %v70
      %vm891 = vcmp.lt.s32.totalorder %v875, %v71
      %v892 = vsel %vm890, 1, 0
      %v893 = vsel %vm891, 1, 0
      %894 = vset.pattern.permute.xlu0 0
      %895 = vperm.xlu0 %894, %v892
      %v896 = vpop.permute.xlu0 %895
      %897 = vset.pattern.permute.xlu0 0
      %898 = vperm.xlu0 %897, %v893
      %v899 = vpop.permute.xlu0 %898
      %vm900 = vcmp.eq.s32.totalorder %v896, 1
      %vm901 = vcmp.eq.s32.totalorder %v899, 1
      %v902 = vsel %vm900, %v873, %v736
      %v903 = vsel %vm901, %v874, %v737
      %s904 = sadd.s32 %s53, 5
      %s905 = scalar_lea.vmem [#allocation8], 160
      %v906 = vld [vmem:[%s905] sm:$0xf]
      %v907 = vld [vmem:[%s905 + $0x4] sm:$0xf]
      %v908 = vld [vmem:[%s905 + $0x8] sm:$0xf]
      %v909 = vld [vmem:[%s905 + $0xc] sm:$0xf]
      %v910 = vld [vmem:[%s905 + $0x10] sm:$0xf]
      %v911 = vld [vmem:[%s905 + $0x14] sm:$0xf]
      %v912 = vld [vmem:[%s905 + $0x18] sm:$0xf]
      %v913 = vld [vmem:[%s905 + $0x1c] sm:$0xf]
      %s914 = scalar_lea.vmem [#allocation6], 160
      %v915 = vld [vmem:[%s914] sm:$0xff]
      %v916 = vld [vmem:[%s914 + $0x8] sm:$0xff]
      %v917 = vld [vmem:[%s914 + $0x10] sm:$0xff]
      %v918 = vld [vmem:[%s914 + $0x18] sm:$0xff]
      %v919 = vpack.c.bf16 %v889, %v888
      %v928 = vunpack.c.l.b16 %v906
      %v929 = vunpack.c.l.b16 %v907
      %v930 = vunpack.c.l.b16 %v908
      %v931 = vunpack.c.l.b16 %v909
      %v932 = vunpack.c.l.b16 %v910
      %v933 = vunpack.c.l.b16 %v911
      %v934 = vunpack.c.l.b16 %v912
      %v935 = vunpack.c.l.b16 %v913
      %v936 = vpack.c.b16 %v929, %v928
      %v937 = vpack.c.b16 %v931, %v930
      %v938 = vpack.c.b16 %v933, %v932
      %v939 = vpack.c.b16 %v935, %v934
      %v945 = vsel %vm113, %v919, 0
      %947 = vmatprep.subr.bf16.mxu0 0
      %948 = vmatpush1.bf16.msra.mxu0 %v936
      %949 = vmatprep.subr.bf16.mxu0 0
      %950 = vmatpush1.bf16.msra.mxu0 %v937
      %951 = vmatprep.subr.bf16.mxu0 0
      %952 = vmatpush1.bf16.msra.mxu0 %v938
      %953 = vmatprep.subr.bf16.mxu0 0
      %954 = vmatpush1.bf16.msra.mxu0 %v939
      %955 = vmatprep.subr.bf16.mxu0 0
      %956 = vmatpush1.bf16.msra.mxu0 0
      %957 = vmatprep.subr.bf16.mxu0 0
      %958 = vmatpush1.bf16.msra.mxu0 0
      %959 = vmatprep.subr.bf16.mxu0 0
      %960 = vmatpush1.bf16.msra.mxu0 0
      %961 = vmatprep.subr.bf16.mxu0 0
      %962 = vmatpush1.bf16.msra.mxu0 0
      %963 = vmatprep.subr.bf16.mxu0 0
      %964 = vmatpush1.bf16.msra.mxu0 0
      %965 = vmatprep.subr.bf16.mxu0 0
      %966 = vmatpush1.bf16.msra.mxu0 0
      %967 = vmatprep.subr.bf16.mxu0 0
      %968 = vmatpush1.bf16.msra.mxu0 0
      %969 = vmatprep.subr.bf16.mxu0 0
      %970 = vmatpush1.bf16.msra.mxu0 0
      %971 = vmatprep.subr.bf16.mxu0 0
      %972 = vmatpush1.bf16.msra.mxu0 0
      %973 = vmatprep.subr.bf16.mxu0 0
      %974 = vmatpush1.bf16.msra.mxu0 0
      %975 = vmatprep.subr.bf16.mxu0 0
      %976 = vmatpush1.bf16.msra.mxu0 0
      %977 = vmatprep.subr.bf16.mxu0 0
      %978 = vmatpush1.bf16.msra.mxu0 0
      %979 = vmatprep.mubr.bf16.mxu0 0
      %980 = vmatmul.mubr.bf16.gmra.mrb[0].mxu0 %v945
      %v981 = vpop.f32.mrb[0].mxu0
      %v982 = vadd.f32 0.0, %v981
      %v983 = vpop.f32.mrb[0].mxu0
      %v984 = vpop.f32.mrb[0].mxu0
      %v985 = vadd.f32 0.0, %v984
      %v986 = vpop.f32.mrb[0].mxu0
      %987 = vdwg.mxu0
      %v988 = vadd.f32 %v915, %v982
      %v989 = vadd.f32 %v916, %v985
      %v990 = vpack.c.bf16 %v903, %v902
      %v992 = vsel %vm113, %v990, 0
      %994 = vmatprep.subr.bf16.mxu0 0
      %995 = vmatpush1.bf16.msra.mxu0 %v936
      %996 = vmatprep.subr.bf16.mxu0 0
      %997 = vmatpush1.bf16.msra.mxu0 %v937
      %998 = vmatprep.subr.bf16.mxu0 0
      %999 = vmatpush1.bf16.msra.mxu0 %v938
      %1000 = vmatprep.subr.bf16.mxu0 0
      %1001 = vmatpush1.bf16.msra.mxu0 %v939
      %1002 = vmatprep.subr.bf16.mxu0 0
      %1003 = vmatpush1.bf16.msra.mxu0 0
      %1004 = vmatprep.subr.bf16.mxu0 0
      %1005 = vmatpush1.bf16.msra.mxu0 0
      %1006 = vmatprep.subr.bf16.mxu0 0
      %1007 = vmatpush1.bf16.msra.mxu0 0
      %1008 = vmatprep.subr.bf16.mxu0 0
      %1009 = vmatpush1.bf16.msra.mxu0 0
      %1010 = vmatprep.subr.bf16.mxu0 0
      %1011 = vmatpush1.bf16.msra.mxu0 0
      %1012 = vmatprep.subr.bf16.mxu0 0
      %1013 = vmatpush1.bf16.msra.mxu0 0
      %1014 = vmatprep.subr.bf16.mxu0 0
      %1015 = vmatpush1.bf16.msra.mxu0 0
      %1016 = vmatprep.subr.bf16.mxu0 0
      %1017 = vmatpush1.bf16.msra.mxu0 0
      %1018 = vmatprep.subr.bf16.mxu0 0
      %1019 = vmatpush1.bf16.msra.mxu0 0
      %1020 = vmatprep.subr.bf16.mxu0 0
      %1021 = vmatpush1.bf16.msra.mxu0 0
      %1022 = vmatprep.subr.bf16.mxu0 0
      %1023 = vmatpush1.bf16.msra.mxu0 0
      %1024 = vmatprep.subr.bf16.mxu0 0
      %1025 = vmatpush1.bf16.msra.mxu0 0
      %1026 = vmatprep.mubr.bf16.mxu0 0
      %1027 = vmatmul.mubr.bf16.gmra.mrb[0].mxu0 %v992
      %v1028 = vpop.f32.mrb[0].mxu0
      %v1029 = vadd.f32 0.0, %v1028
      %v1030 = vpop.f32.mrb[0].mxu0
      %v1031 = vpop.f32.mrb[0].mxu0
      %v1032 = vadd.f32 0.0, %v1031
      %v1033 = vpop.f32.mrb[0].mxu0
      %1034 = vdwg.mxu0
      %v1035 = vadd.f32 %v917, %v1029
      %v1036 = vadd.f32 %v918, %v1032
      %v1037 = vtanh.pop %v988
      %v1038 = vtanh.pop %v989
      %v1039 = vtanh.pop %v1035
      %v1040 = vtanh.pop %v1036
      %v1041 = vstv %s904
      %vm1042 = vcmp.lt.s32.totalorder %v1041, %v68
      %vm1043 = vcmp.lt.s32.totalorder %v1041, %v69
      %v1044 = vsel %vm1042, 1, 0
      %v1045 = vsel %vm1043, 1, 0
      %1046 = vset.pattern.permute.xlu0 0
      %1047 = vperm.xlu0 %1046, %v1044
      %v1048 = vpop.permute.xlu0 %1047
      %1049 = vset.pattern.permute.xlu0 0
      %1050 = vperm.xlu0 %1049, %v1045
      %v1051 = vpop.permute.xlu0 %1050
      %vm1052 = vcmp.eq.s32.totalorder %v1048, 1
      %vm1053 = vcmp.eq.s32.totalorder %v1051, 1
      %v1054 = vsel %vm1052, %v1037, %v888
      %v1055 = vsel %vm1053, %v1038, %v889
      %vm1056 = vcmp.lt.s32.totalorder %v1041, %v70
      %vm1057 = vcmp.lt.s32.totalorder %v1041, %v71
      %v1058 = vsel %vm1056, 1, 0
      %v1059 = vsel %vm1057, 1, 0
      %1060 = vset.pattern.permute.xlu0 0
      %1061 = vperm.xlu0 %1060, %v1058
      %v1062 = vpop.permute.xlu0 %1061
      %1063 = vset.pattern.permute.xlu0 0
      %1064 = vperm.xlu0 %1063, %v1059
      %v1065 = vpop.permute.xlu0 %1064
      %vm1066 = vcmp.eq.s32.totalorder %v1062, 1
      %vm1067 = vcmp.eq.s32.totalorder %v1065, 1
      %v1068 = vsel %vm1066, %v1039, %v902
      %v1069 = vsel %vm1067, %v1040, %v903
      %s1070 = sadd.s32 %s53, 6
      %s1071 = scalar_lea.vmem [#allocation8], 192
      %v1072 = vld [vmem:[%s1071] sm:$0xf]
      %v1073 = vld [vmem:[%s1071 + $0x4] sm:$0xf]
      %v1074 = vld [vmem:[%s1071 + $0x8] sm:$0xf]
      %v1075 = vld [vmem:[%s1071 + $0xc] sm:$0xf]
      %v1076 = vld [vmem:[%s1071 + $0x10] sm:$0xf]
      %v1077 = vld [vmem:[%s1071 + $0x14] sm:$0xf]
      %v1078 = vld [vmem:[%s1071 + $0x18] sm:$0xf]
      %v1079 = vld [vmem:[%s1071 + $0x1c] sm:$0xf]
      %s1080 = scalar_lea.vmem [#allocation6], 192
      %v1081 = vld [vmem:[%s1080] sm:$0xff]
      %v1082 = vld [vmem:[%s1080 + $0x8] sm:$0xff]
      %v1083 = vld [vmem:[%s1080 + $0x10] sm:$0xff]
      %v1084 = vld [vmem:[%s1080 + $0x18] sm:$0xff]
      %v1085 = vpack.c.bf16 %v1055, %v1054
      %v1094 = vunpack.c.l.b16 %v1072
      %v1095 = vunpack.c.l.b16 %v1073
      %v1096 = vunpack.c.l.b16 %v1074
      %v1097 = vunpack.c.l.b16 %v1075
      %v1098 = vunpack.c.l.b16 %v1076
      %v1099 = vunpack.c.l.b16 %v1077
      %v1100 = vunpack.c.l.b16 %v1078
      %v1101 = vunpack.c.l.b16 %v1079
      %v1102 = vpack.c.b16 %v1095, %v1094
      %v1103 = vpack.c.b16 %v1097, %v1096
      %v1104 = vpack.c.b16 %v1099, %v1098
      %v1105 = vpack.c.b16 %v1101, %v1100
      %v1111 = vsel %vm113, %v1085, 0
      %1113 = vmatprep.subr.bf16.mxu0 0
      %1114 = vmatpush1.bf16.msra.mxu0 %v1102
      %1115 = vmatprep.subr.bf16.mxu0 0
      %1116 = vmatpush1.bf16.msra.mxu0 %v1103
      %1117 = vmatprep.subr.bf16.mxu0 0
      %1118 = vmatpush1.bf16.msra.mxu0 %v1104
      %1119 = vmatprep.subr.bf16.mxu0 0
      %1120 = vmatpush1.bf16.msra.mxu0 %v1105
      %1121 = vmatprep.subr.bf16.mxu0 0
      %1122 = vmatpush1.bf16.msra.mxu0 0
      %1123 = vmatprep.subr.bf16.mxu0 0
      %1124 = vmatpush1.bf16.msra.mxu0 0
      %1125 = vmatprep.subr.bf16.mxu0 0
      %1126 = vmatpush1.bf16.msra.mxu0 0
      %1127 = vmatprep.subr.bf16.mxu0 0
      %1128 = vmatpush1.bf16.msra.mxu0 0
      %1129 = vmatprep.subr.bf16.mxu0 0
      %1130 = vmatpush1.bf16.msra.mxu0 0
      %1131 = vmatprep.subr.bf16.mxu0 0
      %1132 = vmatpush1.bf16.msra.mxu0 0
      %1133 = vmatprep.subr.bf16.mxu0 0
      %1134 = vmatpush1.bf16.msra.mxu0 0
      %1135 = vmatprep.subr.bf16.mxu0 0
      %1136 = vmatpush1.bf16.msra.mxu0 0
      %1137 = vmatprep.subr.bf16.mxu0 0
      %1138 = vmatpush1.bf16.msra.mxu0 0
      %1139 = vmatprep.subr.bf16.mxu0 0
      %1140 = vmatpush1.bf16.msra.mxu0 0
      %1141 = vmatprep.subr.bf16.mxu0 0
      %1142 = vmatpush1.bf16.msra.mxu0 0
      %1143 = vmatprep.subr.bf16.mxu0 0
      %1144 = vmatpush1.bf16.msra.mxu0 0
      %1145 = vmatprep.mubr.bf16.mxu0 0
      %1146 = vmatmul.mubr.bf16.gmra.mrb[0].mxu0 %v1111
      %v1147 = vpop.f32.mrb[0].mxu0
      %v1148 = vadd.f32 0.0, %v1147
      %v1149 = vpop.f32.mrb[0].mxu0
      %v1150 = vpop.f32.mrb[0].mxu0
      %v1151 = vadd.f32 0.0, %v1150
      %v1152 = vpop.f32.mrb[0].mxu0
      %1153 = vdwg.mxu0
      %v1154 = vadd.f32 %v1081, %v1148
      %v1155 = vadd.f32 %v1082, %v1151
      %v1156 = vpack.c.bf16 %v1069, %v1068
      %v1158 = vsel %vm113, %v1156, 0
      %1160 = vmatprep.subr.bf16.mxu0 0
      %1161 = vmatpush1.bf16.msra.mxu0 %v1102
      %1162 = vmatprep.subr.bf16.mxu0 0
      %1163 = vmatpush1.bf16.msra.mxu0 %v1103
      %1164 = vmatprep.subr.bf16.mxu0 0
      %1165 = vmatpush1.bf16.msra.mxu0 %v1104
      %1166 = vmatprep.subr.bf16.mxu0 0
      %1167 = vmatpush1.bf16.msra.mxu0 %v1105
      %1168 = vmatprep.subr.bf16.mxu0 0
      %1169 = vmatpush1.bf16.msra.mxu0 0
      %1170 = vmatprep.subr.bf16.mxu0 0
      %1171 = vmatpush1.bf16.msra.mxu0 0
      %1172 = vmatprep.subr.bf16.mxu0 0
      %1173 = vmatpush1.bf16.msra.mxu0 0
      %1174 = vmatprep.subr.bf16.mxu0 0
      %1175 = vmatpush1.bf16.msra.mxu0 0
      %1176 = vmatprep.subr.bf16.mxu0 0
      %1177 = vmatpush1.bf16.msra.mxu0 0
      %1178 = vmatprep.subr.bf16.mxu0 0
      %1179 = vmatpush1.bf16.msra.mxu0 0
      %1180 = vmatprep.subr.bf16.mxu0 0
      %1181 = vmatpush1.bf16.msra.mxu0 0
      %1182 = vmatprep.subr.bf16.mxu0 0
      %1183 = vmatpush1.bf16.msra.mxu0 0
      %1184 = vmatprep.subr.bf16.mxu0 0
      %1185 = vmatpush1.bf16.msra.mxu0 0
      %1186 = vmatprep.subr.bf16.mxu0 0
      %1187 = vmatpush1.bf16.msra.mxu0 0
      %1188 = vmatprep.subr.bf16.mxu0 0
      %1189 = vmatpush1.bf16.msra.mxu0 0
      %1190 = vmatprep.subr.bf16.mxu0 0
      %1191 = vmatpush1.bf16.msra.mxu0 0
      %1192 = vmatprep.mubr.bf16.mxu0 0
      %1193 = vmatmul.mubr.bf16.gmra.mrb[0].mxu0 %v1158
      %v1194 = vpop.f32.mrb[0].mxu0
      %v1195 = vadd.f32 0.0, %v1194
      %v1196 = vpop.f32.mrb[0].mxu0
      %v1197 = vpop.f32.mrb[0].mxu0
      %v1198 = vadd.f32 0.0, %v1197
      %v1199 = vpop.f32.mrb[0].mxu0
      %1200 = vdwg.mxu0
      %v1201 = vadd.f32 %v1083, %v1195
      %v1202 = vadd.f32 %v1084, %v1198
      %v1203 = vtanh.pop %v1154
      %v1204 = vtanh.pop %v1155
      %v1205 = vtanh.pop %v1201
      %v1206 = vtanh.pop %v1202
      %v1207 = vstv %s1070
      %vm1208 = vcmp.lt.s32.totalorder %v1207, %v68
      %vm1209 = vcmp.lt.s32.totalorder %v1207, %v69
      %v1210 = vsel %vm1208, 1, 0
      %v1211 = vsel %vm1209, 1, 0
      %1212 = vset.pattern.permute.xlu0 0
      %1213 = vperm.xlu0 %1212, %v1210
      %v1214 = vpop.permute.xlu0 %1213
      %1215 = vset.pattern.permute.xlu0 0
      %1216 = vperm.xlu0 %1215, %v1211
      %v1217 = vpop.permute.xlu0 %1216
      %vm1218 = vcmp.eq.s32.totalorder %v1214, 1
      %vm1219 = vcmp.eq.s32.totalorder %v1217, 1
      %v1220 = vsel %vm1218, %v1203, %v1054
      %v1221 = vsel %vm1219, %v1204, %v1055
      %vm1222 = vcmp.lt.s32.totalorder %v1207, %v70
      %vm1223 = vcmp.lt.s32.totalorder %v1207, %v71
      %v1224 = vsel %vm1222, 1, 0
      %v1225 = vsel %vm1223, 1, 0
      %1226 = vset.pattern.permute.xlu0 0
      %1227 = vperm.xlu0 %1226, %v1224
      %v1228 = vpop.permute.xlu0 %1227
      %1229 = vset.pattern.permute.xlu0 0
      %1230 = vperm.xlu0 %1229, %v1225
      %v1231 = vpop.permute.xlu0 %1230
      %vm1232 = vcmp.eq.s32.totalorder %v1228, 1
      %vm1233 = vcmp.eq.s32.totalorder %v1231, 1
      %v1234 = vsel %vm1232, %v1205, %v1068
      %v1235 = vsel %vm1233, %v1206, %v1069
      %s1236 = sadd.s32 %s53, 7
      %s1237 = scalar_lea.vmem [#allocation8], 224
      %v1238 = vld [vmem:[%s1237] sm:$0xf]
      %v1239 = vld [vmem:[%s1237 + $0x4] sm:$0xf]
      %v1240 = vld [vmem:[%s1237 + $0x8] sm:$0xf]
      %v1241 = vld [vmem:[%s1237 + $0xc] sm:$0xf]
      %v1242 = vld [vmem:[%s1237 + $0x10] sm:$0xf]
      %v1243 = vld [vmem:[%s1237 + $0x14] sm:$0xf]
      %v1244 = vld [vmem:[%s1237 + $0x18] sm:$0xf]
      %v1245 = vld [vmem:[%s1237 + $0x1c] sm:$0xf]
      %s1246 = scalar_lea.vmem [#allocation6], 224
      %v1247 = vld [vmem:[%s1246] sm:$0xff]
      %v1248 = vld [vmem:[%s1246 + $0x8] sm:$0xff]
      %v1249 = vld [vmem:[%s1246 + $0x10] sm:$0xff]
      %v1250 = vld [vmem:[%s1246 + $0x18] sm:$0xff]
      %v1251 = vpack.c.bf16 %v1221, %v1220
      %v1260 = vunpack.c.l.b16 %v1238
      %v1261 = vunpack.c.l.b16 %v1239
      %v1262 = vunpack.c.l.b16 %v1240
      %v1263 = vunpack.c.l.b16 %v1241
      %v1264 = vunpack.c.l.b16 %v1242
      %v1265 = vunpack.c.l.b16 %v1243
      %v1266 = vunpack.c.l.b16 %v1244
      %v1267 = vunpack.c.l.b16 %v1245
      %v1268 = vpack.c.b16 %v1261, %v1260
      %v1269 = vpack.c.b16 %v1263, %v1262
      %v1270 = vpack.c.b16 %v1265, %v1264
      %v1271 = vpack.c.b16 %v1267, %v1266
      %v1277 = vsel %vm113, %v1251, 0
      %1279 = vmatprep.subr.bf16.mxu0 0
      %1280 = vmatpush1.bf16.msra.mxu0 %v1268
      %1281 = vmatprep.subr.bf16.mxu0 0
      %1282 = vmatpush1.bf16.msra.mxu0 %v1269
      %1283 = vmatprep.subr.bf16.mxu0 0
      %1284 = vmatpush1.bf16.msra.mxu0 %v1270
      %1285 = vmatprep.subr.bf16.mxu0 0
      %1286 = vmatpush1.bf16.msra.mxu0 %v1271
      %1287 = vmatprep.subr.bf16.mxu0 0
      %1288 = vmatpush1.bf16.msra.mxu0 0
      %1289 = vmatprep.subr.bf16.mxu0 0
      %1290 = vmatpush1.bf16.msra.mxu0 0
      %1291 = vmatprep.subr.bf16.mxu0 0
      %1292 = vmatpush1.bf16.msra.mxu0 0
      %1293 = vmatprep.subr.bf16.mxu0 0
      %1294 = vmatpush1.bf16.msra.mxu0 0
      %1295 = vmatprep.subr.bf16.mxu0 0
      %1296 = vmatpush1.bf16.msra.mxu0 0
      %1297 = vmatprep.subr.bf16.mxu0 0
      %1298 = vmatpush1.bf16.msra.mxu0 0
      %1299 = vmatprep.subr.bf16.mxu0 0
      %1300 = vmatpush1.bf16.msra.mxu0 0
      %1301 = vmatprep.subr.bf16.mxu0 0
      %1302 = vmatpush1.bf16.msra.mxu0 0
      %1303 = vmatprep.subr.bf16.mxu0 0
      %1304 = vmatpush1.bf16.msra.mxu0 0
      %1305 = vmatprep.subr.bf16.mxu0 0
      %1306 = vmatpush1.bf16.msra.mxu0 0
      %1307 = vmatprep.subr.bf16.mxu0 0
      %1308 = vmatpush1.bf16.msra.mxu0 0
      %1309 = vmatprep.subr.bf16.mxu0 0
      %1310 = vmatpush1.bf16.msra.mxu0 0
      %1311 = vmatprep.mubr.bf16.mxu0 0
      %1312 = vmatmul.mubr.bf16.gmra.mrb[0].mxu0 %v1277
      %v1313 = vpop.f32.mrb[0].mxu0
      %v1314 = vadd.f32 0.0, %v1313
      %v1315 = vpop.f32.mrb[0].mxu0
      %v1316 = vpop.f32.mrb[0].mxu0
      %v1317 = vadd.f32 0.0, %v1316
      %v1318 = vpop.f32.mrb[0].mxu0
      %1319 = vdwg.mxu0
      %v1320 = vadd.f32 %v1247, %v1314
      %v1321 = vadd.f32 %v1248, %v1317
      %v1322 = vpack.c.bf16 %v1235, %v1234
      %v1324 = vsel %vm113, %v1322, 0
      %1326 = vmatprep.subr.bf16.mxu0 0
      %1327 = vmatpush1.bf16.msra.mxu0 %v1268
      %1328 = vmatprep.subr.bf16.mxu0 0
      %1329 = vmatpush1.bf16.msra.mxu0 %v1269
      %1330 = vmatprep.subr.bf16.mxu0 0
      %1331 = vmatpush1.bf16.msra.mxu0 %v1270
      %1332 = vmatprep.subr.bf16.mxu0 0
      %1333 = vmatpush1.bf16.msra.mxu0 %v1271
      %1334 = vmatprep.subr.bf16.mxu0 0
      %1335 = vmatpush1.bf16.msra.mxu0 0
      %1336 = vmatprep.subr.bf16.mxu0 0
      %1337 = vmatpush1.bf16.msra.mxu0 0
      %1338 = vmatprep.subr.bf16.mxu0 0
      %1339 = vmatpush1.bf16.msra.mxu0 0
      %1340 = vmatprep.subr.bf16.mxu0 0
      %1341 = vmatpush1.bf16.msra.mxu0 0
      %1342 = vmatprep.subr.bf16.mxu0 0
      %1343 = vmatpush1.bf16.msra.mxu0 0
      %1344 = vmatprep.subr.bf16.mxu0 0
      %1345 = vmatpush1.bf16.msra.mxu0 0
      %1346 = vmatprep.subr.bf16.mxu0 0
      %1347 = vmatpush1.bf16.msra.mxu0 0
      %1348 = vmatprep.subr.bf16.mxu0 0
      %1349 = vmatpush1.bf16.msra.mxu0 0
      %1350 = vmatprep.subr.bf16.mxu0 0
      %1351 = vmatpush1.bf16.msra.mxu0 0
      %1352 = vmatprep.subr.bf16.mxu0 0
      %1353 = vmatpush1.bf16.msra.mxu0 0
      %1354 = vmatprep.subr.bf16.mxu0 0
      %1355 = vmatpush1.bf16.msra.mxu0 0
      %1356 = vmatprep.subr.bf16.mxu0 0
      %1357 = vmatpush1.bf16.msra.mxu0 0
      %1358 = vmatprep.mubr.bf16.mxu0 0
      %1359 = vmatmul.mubr.bf16.gmra.mrb[0].mxu0 %v1324
      %v1360 = vpop.f32.mrb[0].mxu0
      %v1361 = vadd.f32 0.0, %v1360
      %v1362 = vpop.f32.mrb[0].mxu0
      %v1363 = vpop.f32.mrb[0].mxu0
      %v1364 = vadd.f32 0.0, %v1363
      %v1365 = vpop.f32.mrb[0].mxu0
      %1366 = vdwg.mxu0
      %v1367 = vadd.f32 %v1249, %v1361
      %v1368 = vadd.f32 %v1250, %v1364
      %v1369 = vtanh.pop %v1320
      %v1370 = vtanh.pop %v1321
      %v1371 = vtanh.pop %v1367
      %v1372 = vtanh.pop %v1368
      %v1373 = vstv %s1236
      %vm1374 = vcmp.lt.s32.totalorder %v1373, %v68
      %vm1375 = vcmp.lt.s32.totalorder %v1373, %v69
      %v1376 = vsel %vm1374, 1, 0
      %v1377 = vsel %vm1375, 1, 0
      %1378 = vset.pattern.permute.xlu0 0
      %1379 = vperm.xlu0 %1378, %v1376
      %v1380 = vpop.permute.xlu0 %1379
      %1381 = vset.pattern.permute.xlu0 0
      %1382 = vperm.xlu0 %1381, %v1377
      %v1383 = vpop.permute.xlu0 %1382
      %vm1384 = vcmp.eq.s32.totalorder %v1380, 1
      %vm1385 = vcmp.eq.s32.totalorder %v1383, 1
      %v1386 = vsel %vm1384, %v1369, %v1220
      %v1387 = vsel %vm1385, %v1370, %v1221
      %vm1388 = vcmp.lt.s32.totalorder %v1373, %v70
      %vm1389 = vcmp.lt.s32.totalorder %v1373, %v71
      %v1390 = vsel %vm1388, 1, 0
      %v1391 = vsel %vm1389, 1, 0
      %1392 = vset.pattern.permute.xlu0 0
      %1393 = vperm.xlu0 %1392, %v1390
      %v1394 = vpop.permute.xlu0 %1393
      %1395 = vset.pattern.permute.xlu0 0
      %1396 = vperm.xlu0 %1395, %v1391
      %v1397 = vpop.permute.xlu0 %1396
      %vm1398 = vcmp.eq.s32.totalorder %v1394, 1
      %vm1399 = vcmp.eq.s32.totalorder %v1397, 1
      %v1400 = vsel %vm1398, %v1371, %v1234
      %v1401 = vsel %vm1399, %v1372, %v1235
      %1402 = vst.msk [vmem:[#allocation2] sm:$0xff] %vm113, %v1386
      %1403 = vst.msk [vmem:[#allocation2 + $0x8] sm:$0xff] %vm113, %v1387
      %1404 = vst.msk [vmem:[#allocation2 + $0x10] sm:$0xff] %vm113, %v1400
      %1405 = vst.msk [vmem:[#allocation2 + $0x18] sm:$0xff] %vm113, %v1401
    $region37: #{tpu_custom_call.1} parent=1 // pred_fallthru
      _
    // Predicated region
    $region38: #{tpu_custom_call.1} parent=1 // pred_check
      %p1406 = pneg %p54
    $region39: #{tpu_custom_call.1} parent=1 // pred_check_branch
      %1408 = sbr.rel (%p1406) target = $region41
    $region40: #{tpu_custom_call.1} parent=1 // pred_region
      %v1409 = vld [vmem:[#allocation2] sm:$0xff]
      %v1410 = vld [vmem:[#allocation2 + $0x8] sm:$0xff]
      %v1411 = vld [vmem:[#allocation2 + $0x10] sm:$0xff]
      %v1412 = vld [vmem:[#allocation2 + $0x18] sm:$0xff]
      %v1413 = vld [vmem:[%s4] sm:$0xff]
      %v1414 = vld [vmem:[%s4 + $0x8] sm:$0xff]
      %v1415 = vld [vmem:[%s4 + $0x10] sm:$0xff]
      %v1416 = vld [vmem:[%s4 + $0x18] sm:$0xff]
      %v1417 = vld [vmem:[%s4 + $0x20] sm:$0xff]
      %v1418 = vld [vmem:[%s4 + $0x28] sm:$0xff]
      %v1419 = vld [vmem:[%s4 + $0x30] sm:$0xff]
      %v1420 = vld [vmem:[%s4 + $0x38] sm:$0xff]
      %v1421 = vld [vmem:[#allocation5] sm:$0x1]
      %v1423 = vlaneseq
      %v1424 = vshrl.u32 %v1423, 7
      %v1425 = vsub.s32 0, %v1424
      %v1426 = vrot.slane %v1421, %v1425
      %vm1428 = vcmask 523264
      %v1430 = vsel %vm1428, %v1409, 0
      %v1433 = vsel %vm1428, %v1410, 0
      %v1436 = vsel %vm1428, %v1411, 0
      %v1439 = vsel %vm1428, %v1412, 0
      %1441 = vmatprep.subr.mxu0 0.0
      %1442 = vmatpush1.msra.mxu0 %v1413
      %1443 = vmatprep.subr.mxu0 0.0
      %1444 = vmatpush1.msra.mxu0 %v1414
      %1445 = vmatprep.subr.mxu0 0.0
      %1446 = vmatpush1.msra.mxu0 %v1415
      %1447 = vmatprep.subr.mxu0 0.0
      %1448 = vmatpush1.msra.mxu0 %v1416
      %1449 = vmatprep.subr.mxu0 0.0
      %1450 = vmatpush1.msra.mxu0 %v1417
      %1451 = vmatprep.subr.mxu0 0.0
      %1452 = vmatpush1.msra.mxu0 %v1418
      %1453 = vmatprep.subr.mxu0 0.0
      %1454 = vmatpush1.msra.mxu0 %v1419
      %1455 = vmatprep.subr.mxu0 0.0
      %1456 = vmatpush1.msra.mxu0 %v1420
      %1457 = vmatprep.subr.mxu0 0.0
      %1458 = vmatpush1.msra.mxu0 0.0
      %1459 = vmatprep.subr.mxu0 0.0
      %1460 = vmatpush1.msra.mxu0 0.0
      %1461 = vmatprep.subr.mxu0 0.0
      %1462 = vmatpush1.msra.mxu0 0.0
      %1463 = vmatprep.subr.mxu0 0.0
      %1464 = vmatpush1.msra.mxu0 0.0
      %1465 = vmatprep.subr.mxu0 0.0
      %1466 = vmatpush1.msra.mxu0 0.0
      %1467 = vmatprep.subr.mxu0 0.0
      %1468 = vmatpush1.msra.mxu0 0.0
      %1469 = vmatprep.subr.mxu0 0.0
      %1470 = vmatpush1.msra.mxu0 0.0
      %1471 = vmatprep.subr.mxu0 0.0
      %1472 = vmatpush1.msra.mxu0 0.0
      %1473 = vmatprep.subr.mxu0 0.0
      %1474 = vmatpush1.msra.mxu0 0.0
      %1475 = vmatprep.subr.mxu0 0.0
      %1476 = vmatpush1.msra.mxu0 0.0
      %1477 = vmatprep.subr.mxu0 0.0
      %1478 = vmatpush1.msra.mxu0 0.0
      %1479 = vmatprep.subr.mxu0 0.0
      %1480 = vmatpush1.msra.mxu0 0.0
      %1481 = vmatprep.subr.mxu0 0.0
      %1482 = vmatpush1.msra.mxu0 0.0
      %1483 = vmatprep.subr.mxu0 0.0
      %1484 = vmatpush1.msra.mxu0 0.0
      %1485 = vmatprep.subr.mxu0 0.0
      %1486 = vmatpush1.msra.mxu0 0.0
      %1487 = vmatprep.subr.mxu0 0.0
      %1488 = vmatpush1.msra.mxu0 0.0
      %1489 = vmatprep.subr.mxu0 0.0
      %1490 = vmatpush1.msra.mxu0 0.0
      %1491 = vmatprep.subr.mxu0 0.0
      %1492 = vmatpush1.msra.mxu0 0.0
      %1493 = vmatprep.subr.mxu0 0.0
      %1494 = vmatpush1.msra.mxu0 0.0
      %1495 = vmatprep.subr.mxu0 0.0
      %1496 = vmatpush1.msra.mxu0 0.0
      %1497 = vmatprep.subr.mxu0 0.0
      %1498 = vmatpush1.msra.mxu0 0.0
      %1499 = vmatprep.subr.mxu0 0.0
      %1500 = vmatpush1.msra.mxu0 0.0
      %1501 = vmatprep.subr.mxu0 0.0
      %1502 = vmatpush1.msra.mxu0 0.0
      %1503 = vmatprep.subr.mxu0 0.0
      %1504 = vmatpush1.msra.mxu0 0.0
      %1505 = vmatprep.mubr.f32.mxu0 0.0
      %1506 = vmatmul.mubr.f32.gmra.mrb[0].mxu0 %v1430
      %v1507 = vpop.f32.mrb[0].mxu0
      %v1508 = vadd.f32 %v1426, %v1507
      %v1509 = vpop.f32.mrb[0].mxu0
      %1510 = vmatprep.mubr.f32.mxu0 0.0
      %1511 = vmatmul.mubr.f32.gmra.mrb[0].mxu0 %v1433
      %v1512 = vpop.f32.mrb[0].mxu0
      %v1513 = vadd.f32 %v1426, %v1512
      %v1514 = vpop.f32.mrb[0].mxu0
      %1515 = vmatprep.mubr.f32.mxu0 0.0
      %1516 = vmatmul.mubr.f32.gmra.mrb[0].mxu0 %v1436
      %v1517 = vpop.f32.mrb[0].mxu0
      %v1518 = vadd.f32 %v1426, %v1517
      %v1519 = vpop.f32.mrb[0].mxu0
      %1520 = vmatprep.mubr.f32.mxu0 0.0
      %1521 = vmatmul.mubr.f32.gmra.mrb[0].mxu0 %v1439
      %v1522 = vpop.f32.mrb[0].mxu0
      %v1523 = vadd.f32 %v1426, %v1522
      %v1524 = vpop.f32.mrb[0].mxu0
      %1525 = vdwg.mxu0
      %vm1526 = vcmask 7168
      %1527 = vst.msk [vmem:[%s6] sm:$0xff] %vm1526, %v1508
      %1528 = vst.msk [vmem:[%s6 + $0x8] sm:$0xff] %vm1526, %v1513
      %1529 = vst.msk [vmem:[%s6 + $0x10] sm:$0xff] %vm1526, %v1518
      %1530 = vst.msk [vmem:[%s6 + $0x18] sm:$0xff] %vm1526, %v1523
    $region41: #{tpu_custom_call.1} parent=1 // pred_fallthru
      _
    // Predicated region
    $region42: #{tpu_custom_call.1} parent=1 // pred_check
      _
    $region43: #{tpu_custom_call.1} parent=1 // pred_check_branch
      %1532 = sbr.rel (0) target = $region45
    $region44: #{tpu_custom_call.1} parent=1 // pred_region
      _
    $region45: #{tpu_custom_call.1} parent=1 // pred_fallthru
      _
    // Predicated region
    $region46: #{tpu_custom_call.1} parent=1 // pred_check
      _
    $region47: #{tpu_custom_call.1} parent=1 // pred_check_branch
      %1534 = sbr.rel (0) target = $region49
    $region48: #{tpu_custom_call.1} parent=1 // pred_region
      _
    $region49: #{tpu_custom_call.1} parent=1 // pred_fallthru
      _
    %1535 = vsyncpa [#allocation7], 1
    %1536 = vsyncpa [#allocation9], 1

</llo_original>
